<compile_context>
chip_gen: v6e
topology: v6e:2x2x1
jax: 0.10.0
libtpu: 0.0.40
codegen_flags: <defaults>
</compile_context>

<pallas_src>
import jax
import jax.numpy as jnp
import numpy as np
from jax import lax
from jax.experimental import pallas as pl
from jax.experimental.pallas import tpu as pltpu

INPUT_SIZE = 5
HIDDEN = 64
NUM_LAYERS = 2
NUM_CLASSES = 6


# ---------------------------------------------------------------------------
# Fused Pallas kernel: LSTM layer 0 + LSTM layer 1 (skewed/packed) + FC head
# ---------------------------------------------------------------------------
def _make_fused_kernel(T, B, H):
    H2 = 2 * H        # packed state width  ([h0|h1], [c0|c1])  = 128 lanes
    G8 = 8 * H        # packed gate width   ([i0 i1|f0 f1|o0 o1|g0 g1]) = 512 lanes

    def kernel(x_ref, wih0w_ref, bw_ref, wblk_ref, wfc_ref, bfc_ref,
               out_ref, gin_ref):
        # One-shot layer-0 input projection for ALL timesteps, already in the packed
        # interleaved 8H column layout. Layer-1 columns of wih0_wide are zero, so the
        # layer-1 half of every row is exactly b1 (time-invariant). Stored in VMEM
        # scratch so only one (B, 8H) slice is live per loop step.
        gin_ref[...] = (
            jnp.dot(x_ref[...], wih0w_ref[...], preferred_element_type=jnp.float32)
            + bw_ref[...]
        )

        def packed_cell(gates, c_prev):
            # gates: (B, 8H) with columns [i0 i1 | f0 f1 | o0 o1 | g0 g1]  (H=64)
            # -> every slice below sits on a 128-lane vreg boundary.
            sig = jax.nn.sigmoid(gates[:, :3 * H2])       # 3 full vregs (i, f, o)
            i = sig[:, 0:H2]
            f = sig[:, H2:2 * H2]
            o = sig[:, 2 * H2:3 * H2]
            g = jnp.tanh(gates[:, 3 * H2:])               # 1 full vreg
            c_new = f * c_prev + i * g                    # packed [c0|c1]
            h_new = o * jnp.tanh(c_new)                   # packed [h0|h1]
            return h_new, c_new

        # ---- prologue: layer-0 step t=0. Recurrent lhs is all-zero, so no matmul;
        # the packed cell also runs a junk layer-1 half which is masked back to the
        # required zero initial state h1(-1)=c1(-1)=0.
        zeros_state = jnp.zeros((B, H2), jnp.float32)
        h_pk, c_pk = packed_cell(gin_ref[0:B, :], zeros_state)
        keep = lax.broadcasted_iota(jnp.int32, (B, H2), 1) < H
        h_pk = jnp.where(keep, h_pk, 0.0)                 # [h0(0) | 0]
        c_pk = jnp.where(keep, c_pk, 0.0)                 # [c0(0) | 0]

        # TODO(synk): nn.LSTM applies dropout(0.3) between layers only in training
        # mode; this is the eval/inference forward, so it is a no-op here.

        # ---- skewed main loop (fully unrolled, T static & small):
        # lhs = [h0(t) | h1(t-1)]  @  [[Whh0, Wih1],[0, Whh1]]  ->  [g0_rec(t+1) | g1_rec(t)]
        # one packed cell then yields [h0(t+1) | h1(t)], [c0(t+1) | c1(t)].
        for t in range(T):
            # For the last step the layer-0 half is discarded; the layer-1 columns of
            # gin are just b1 (time-invariant), so reusing row block T-1 is correct.
            idx = min(t + 1, T - 1) * B
            g_pk = (
                jnp.dot(h_pk, wblk_ref[...], preferred_element_type=jnp.float32)
                + gin_ref[idx:idx + B, :]
            )
            h_pk, c_pk = packed_cell(g_pk, c_pk)

        # h_pk = [h0(T) (unused) | h1(T-1)]. wfc_wide has zero rows for the h0 half,
        # so the packed state feeds the FC matmul directly (K=128, no sub-slice).
        out_ref[...] = (
            jnp.dot(h_pk, wfc_ref[...], preferred_element_type=jnp.float32)
            + bfc_ref[...]
        )

    return kernel


# ---------------------------------------------------------------------------
# Weight prep — done ONCE at model load (hoisted out of the per-call forward).
# Builds the interleaved/packed layouts the kernel consumes.
# ---------------------------------------------------------------------------
def prep_params(params):
    H, C = HIDDEN, NUM_CLASSES
    w_ih0, w_hh0, b_ih0, b_hh0 = params["layer0"]
    w_ih1, w_hh1, b_ih1, b_hh1 = params["layer1"]
    w_fc, b_fc = params["fc"]

    # PyTorch gate row order is (i, f, g, o); extract one gate's rows.
    offs = {"i": 0, "f": 1, "g": 2, "o": 3}

    def gate(w, name):
        o = offs[name] * H
        return w[o:o + H]

    b0 = b_ih0 + b_hh0
    b1 = b_ih1 + b_hh1
    in_dim = w_ih0.shape[1]
    zeros_in = jnp.zeros((in_dim, H), jnp.float32)
    zeros_h = jnp.zeros((H, H), jnp.float32)

    gate_order = ("i", "f", "o", "g")   # sigmoid gates first, tanh gate last

    # Layer-0 input-projection weight widened to the packed 8H layout
    # (layer-1 gate columns are zero: x only feeds layer 0).
    wih0_wide = jnp.concatenate(
        [blk for g in gate_order for blk in (gate(w_ih0, g).T, zeros_in)], axis=1
    )                                                           # (In, 8H)

    # Packed bias: [b0_i, b1_i, b0_f, b1_f, b0_o, b1_o, b0_g, b1_g].
    bias_wide = jnp.concatenate(
        [blk for g in gate_order for blk in (gate(b0, g), gate(b1, g))]
    ).reshape(1, -1)                                            # (1, 8H)

    # Fused recurrent block weight (2H, 8H):
    #   rows 0:H  (multiply h0(t))   -> Whh0 in layer-0 cols, Wih1 in layer-1 cols
    #   rows H:2H (multiply h1(t-1)) -> 0    in layer-0 cols, Whh1 in layer-1 cols
    w_block = jnp.concatenate(
        [blk
         for g in gate_order
         for blk in (
             jnp.concatenate([gate(w_hh0, g).T, zeros_h], axis=0),
             jnp.concatenate([gate(w_ih1, g).T, gate(w_hh1, g).T], axis=0),
         )],
        axis=1,
    )                                                           # (2H, 8H)

    # FC weight widened with zero rows so the packed [h0|h1] state is the lhs.
    wfc_wide = jnp.concatenate(
        [jnp.zeros((H, C), jnp.float32), w_fc.T], axis=0)       # (2H, C)
    bfc = b_fc.reshape(1, -1)                                   # (1, C)

    return dict(wih0_wide=wih0_wide, bias_wide=bias_wide, w_block=w_block,
                wfc_wide=wfc_wide, bfc=bfc)


# ---------------------------------------------------------------------------
# Jitted forward: one fused pallas_call, weights already prepped.
# ---------------------------------------------------------------------------
def lstm_model_forward(x, prepped):
    """x: (B, T, input_size), batch_first like the PyTorch module. Returns (B, C)."""
    B, T, In = x.shape
    H, C = HIDDEN, NUM_CLASSES

    # time-major, flattened for the one-shot input projection: (T*B, In)
    x2d = jnp.transpose(x, (1, 0, 2)).reshape(T * B, In)

    vmem = pl.BlockSpec(memory_space=pltpu.MemorySpace.VMEM)
    return pl.pallas_call(
        _make_fused_kernel(T, B, H),
        out_shape=jax.ShapeDtypeStruct((B, C), jnp.float32),
        in_specs=[vmem] * 6,
        out_specs=vmem,
        scratch_shapes=[pltpu.VMEM((T * B, 8 * H), jnp.float32)],
    )(x2d, prepped["wih0_wide"], prepped["bias_wide"], prepped["w_block"],
      prepped["wfc_wide"], prepped["bfc"])


lstm_model_forward = jax.jit(lstm_model_forward)


# ---------------------------------------------------------------------------
# Pure-JAX reference (canonical PyTorch gate order / layout) for correctness
# ---------------------------------------------------------------------------
def lstm_model_ref(x, params):
    B, T, _ = x.shape
    H = HIDDEN
    xs = jnp.transpose(x, (1, 0, 2))          # (T, B, In)
    for l in range(NUM_LAYERS):
        w_ih, w_hh, b_ih, b_hh = params[f"layer{l}"]

        def step(carry, x_t):
            h, c = carry
            gates = x_t @ w_ih.T + h @ w_hh.T + b_ih + b_hh
            i = jax.nn.sigmoid(gates[:, 0:H])
            f = jax.nn.sigmoid(gates[:, H:2 * H])
            g = jnp.tanh(gates[:, 2 * H:3 * H])
            o = jax.nn.sigmoid(gates[:, 3 * H:4 * H])
            c = f * c + i * g
            h = o * jnp.tanh(c)
            return (h, c), h

        (_, _), xs = lax.scan(
            step,
            (jnp.zeros((B, H), jnp.float32), jnp.zeros((B, H), jnp.float32)),
            xs,
        )
    w_fc, b_fc = params["fc"]
    return xs[-1] @ w_fc.T + b_fc


# ---------------------------------------------------------------------------
# Deterministic parameter init (PyTorch-style U(-1/sqrt(H), 1/sqrt(H)), raw layout)
# ---------------------------------------------------------------------------
def init_params(key):
    k = 1.0 / np.sqrt(HIDDEN)
    params = {}
    for l in range(NUM_LAYERS):
        in_dim = INPUT_SIZE if l == 0 else HIDDEN
        key, k1, k2, k3, k4 = jax.random.split(key, 5)
        w_ih = jax.random.uniform(k1, (4 * HIDDEN, in_dim), jnp.float32, -k, k)
        w_hh = jax.random.uniform(k2, (4 * HIDDEN, HIDDEN), jnp.float32, -k, k)
        b_ih = jax.random.uniform(k3, (4 * HIDDEN,), jnp.float32, -k, k)
        b_hh = jax.random.uniform(k4, (4 * HIDDEN,), jnp.float32, -k, k)
        params[f"layer{l}"] = (w_ih, w_hh, b_ih, b_hh)
    key, k5, k6 = jax.random.split(key, 3)
    w_fc = jax.random.uniform(k5, (NUM_CLASSES, HIDDEN), jnp.float32, -k, k)
    b_fc = jax.random.uniform(k6, (NUM_CLASSES,), jnp.float32, -k, k)
    params["fc"] = (w_fc, b_fc)
    return params


if __name__ == "__main__":
    key = jax.random.PRNGKey(0)
    key, pkey, xkey = jax.random.split(key, 3)
    params = init_params(pkey)
    prepped = prep_params(params)        # one-time layout prep, outside the jitted forward

    B, T = 8, 8
    x = jax.random.normal(xkey, (B, T, INPUT_SIZE), jnp.float32)

    out = jax.block_until_ready(lstm_model_forward(x, prepped))
    ref = lstm_model_ref(x, params)

    assert out.shape == (B, NUM_CLASSES), out.shape
    np.testing.assert_allclose(np.asarray(out), np.asarray(ref), rtol=1e-4, atol=1e-4)

    print("KERNEL_OK")
</pallas_src>

<mosaic_0001>
module attributes {stable_mosaic.version = 11 : i64} {
  func.func @kernel(%arg0: memref<64x5xf32, #tpu.memory_space<vmem>>, %arg1: memref<5x512xf32, #tpu.memory_space<vmem>>, %arg2: memref<1x512xf32, #tpu.memory_space<vmem>>, %arg3: memref<128x512xf32, #tpu.memory_space<vmem>>, %arg4: memref<128x6xf32, #tpu.memory_space<vmem>>, %arg5: memref<1x6xf32, #tpu.memory_space<vmem>>, %arg6: memref<8x6xf32, #tpu.memory_space<vmem>>, %arg7: memref<64x512xf32, #tpu.memory_space<vmem>>) attributes {dimension_semantics = [], scalar_prefetch = 0 : i64, scratch_operands = 1 : i64, tpu.core_type = #tpu.core_type<tc>} {
    %c0 = arith.constant 0 : index
    %c0_0 = arith.constant 0 : index
    %0 = vector.load %arg0[%c0, %c0_0] : memref<64x5xf32, #tpu.memory_space<vmem>>, vector<64x5xf32>
    %c0_1 = arith.constant 0 : index
    %c0_2 = arith.constant 0 : index
    %1 = vector.load %arg1[%c0_1, %c0_2] : memref<5x512xf32, #tpu.memory_space<vmem>>, vector<5x512xf32>
    %cst = arith.constant dense<0.000000e+00> : vector<64x512xf32>
    %2 = tpu.matmul %0, %1, %cst {dimension_numbers = #tpu.dot_dimension_numbers<[1], [0], [0], [1], [0, 0, 1, 1], [], []>} : vector<64x5xf32>, vector<5x512xf32>, vector<64x512xf32> -> vector<64x512xf32>
    %c0_3 = arith.constant 0 : index
    %c0_4 = arith.constant 0 : index
    %3 = vector.load %arg2[%c0_3, %c0_4] : memref<1x512xf32, #tpu.memory_space<vmem>>, vector<1x512xf32>
    %4 = vector.broadcast %3 : vector<1x512xf32> to vector<64x512xf32>
    %5 = arith.addf %2, %4 : vector<64x512xf32>
    %c0_5 = arith.constant 0 : index
    %c0_6 = arith.constant 0 : index
    %6 = vector.load %arg7[%c0_5, %c0_6] : memref<64x512xf32, #tpu.memory_space<vmem>>, vector<64x512xf32>
    tpu.vector_store %arg7[%c0_5, %c0_6], %5 {strides = array<i32>} : memref<64x512xf32, #tpu.memory_space<vmem>>, vector<64x512xf32>,
    %cst_7 = arith.constant 0.000000e+00 : f32
    %7 = vector.broadcast %cst_7 : f32 to vector<8x128xf32>
    %c0_8 = arith.constant 0 : index
    %c0_9 = arith.constant 0 : index
    %8 = vector.load %arg7[%c0_8, %c0_9] : memref<64x512xf32, #tpu.memory_space<vmem>>, vector<8x512xf32>
    %9 = vector.extract_strided_slice %8 {offsets = [0, 0], sizes = [8, 384], strides = [1, 1]} : vector<8x512xf32> to vector<8x384xf32>
    %10 = arith.negf %9 : vector<8x384xf32>
    %11 = math.exp %10 : vector<8x384xf32>
    %cst_10 = arith.constant 1.000000e+00 : f32
    %12 = vector.broadcast %cst_10 : f32 to vector<8x384xf32>
    %13 = arith.addf %12, %11 : vector<8x384xf32>
    %14 = arith.divf %12, %13 : vector<8x384xf32>
    %15 = vector.extract_strided_slice %14 {offsets = [0, 0], sizes = [8, 128], strides = [1, 1]} : vector<8x384xf32> to vector<8x128xf32>
    %16 = vector.extract_strided_slice %14 {offsets = [0, 128], sizes = [8, 128], strides = [1, 1]} : vector<8x384xf32> to vector<8x128xf32>
    %17 = vector.extract_strided_slice %14 {offsets = [0, 256], sizes = [8, 128], strides = [1, 1]} : vector<8x384xf32> to vector<8x128xf32>
    %18 = vector.extract_strided_slice %8 {offsets = [0, 384], sizes = [8, 128], strides = [1, 1]} : vector<8x512xf32> to vector<8x128xf32>
    %19 = math.tanh %18 : vector<8x128xf32>
    %20 = arith.mulf %16, %7 : vector<8x128xf32>
    %21 = arith.mulf %15, %19 : vector<8x128xf32>
    %22 = arith.addf %20, %21 : vector<8x128xf32>
    %23 = math.tanh %22 : vector<8x128xf32>
    %24 = arith.mulf %17, %23 : vector<8x128xf32>
    %25 = tpu.iota {dimensions = array<i32: 1>} : vector<8x128xi32>
    %c64_i32 = arith.constant 64 : i32
    %26 = vector.broadcast %c64_i32 : i32 to vector<8x128xi32>
    %27 = arith.cmpi slt, %25, %26 : vector<8x128xi32>
    %cst_11 = arith.constant 0.000000e+00 : f32
    %28 = vector.broadcast %cst_11 : f32 to vector<8x128xf32>
    %29 = arith.select %27, %24, %28 : vector<8x128xi1>, vector<8x128xf32>
    %cst_12 = arith.constant 0.000000e+00 : f32
    %30 = vector.broadcast %cst_12 : f32 to vector<8x128xf32>
    %31 = arith.select %27, %22, %30 : vector<8x128xi1>, vector<8x128xf32>
    %c0_13 = arith.constant 0 : index
    %c0_14 = arith.constant 0 : index
    %32 = vector.load %arg3[%c0_13, %c0_14] : memref<128x512xf32, #tpu.memory_space<vmem>>, vector<128x512xf32>
    %cst_15 = arith.constant dense<0.000000e+00> : vector<8x512xf32>
    %33 = tpu.matmul %29, %32, %cst_15 {dimension_numbers = #tpu.dot_dimension_numbers<[1], [0], [0], [1], [0, 0, 1, 1], [], []>} : vector<8x128xf32>, vector<128x512xf32>, vector<8x512xf32> -> vector<8x512xf32>
    %c8 = arith.constant 8 : index
    %c0_16 = arith.constant 0 : index
    %34 = vector.load %arg7[%c8, %c0_16] : memref<64x512xf32, #tpu.memory_space<vmem>>, vector<8x512xf32>
    %35 = arith.addf %33, %34 : vector<8x512xf32>
    %36 = vector.extract_strided_slice %35 {offsets = [0, 0], sizes = [8, 384], strides = [1, 1]} : vector<8x512xf32> to vector<8x384xf32>
    %37 = arith.negf %36 : vector<8x384xf32>
    %38 = math.exp %37 : vector<8x384xf32>
    %cst_17 = arith.constant 1.000000e+00 : f32
    %39 = vector.broadcast %cst_17 : f32 to vector<8x384xf32>
    %40 = arith.addf %39, %38 : vector<8x384xf32>
    %41 = arith.divf %39, %40 : vector<8x384xf32>
    %42 = vector.extract_strided_slice %41 {offsets = [0, 0], sizes = [8, 128], strides = [1, 1]} : vector<8x384xf32> to vector<8x128xf32>
    %43 = vector.extract_strided_slice %41 {offsets = [0, 128], sizes = [8, 128], strides = [1, 1]} : vector<8x384xf32> to vector<8x128xf32>
    %44 = vector.extract_strided_slice %41 {offsets = [0, 256], sizes = [8, 128], strides = [1, 1]} : vector<8x384xf32> to vector<8x128xf32>
    %45 = vector.extract_strided_slice %35 {offsets = [0, 384], sizes = [8, 128], strides = [1, 1]} : vector<8x512xf32> to vector<8x128xf32>
    %46 = math.tanh %45 : vector<8x128xf32>
    %47 = arith.mulf %43, %31 : vector<8x128xf32>
    %48 = arith.mulf %42, %46 : vector<8x128xf32>
    %49 = arith.addf %47, %48 : vector<8x128xf32>
    %50 = math.tanh %49 : vector<8x128xf32>
    %51 = arith.mulf %44, %50 : vector<8x128xf32>
    %c0_18 = arith.constant 0 : index
    %c0_19 = arith.constant 0 : index
    %52 = vector.load %arg3[%c0_18, %c0_19] : memref<128x512xf32, #tpu.memory_space<vmem>>, vector<128x512xf32>
    %cst_20 = arith.constant dense<0.000000e+00> : vector<8x512xf32>
    %53 = tpu.matmul %51, %52, %cst_20 {dimension_numbers = #tpu.dot_dimension_numbers<[1], [0], [0], [1], [0, 0, 1, 1], [], []>} : vector<8x128xf32>, vector<128x512xf32>, vector<8x512xf32> -> vector<8x512xf32>
    %c16 = arith.constant 16 : index
    %c0_21 = arith.constant 0 : index
    %54 = vector.load %arg7[%c16, %c0_21] : memref<64x512xf32, #tpu.memory_space<vmem>>, vector<8x512xf32>
    %55 = arith.addf %53, %54 : vector<8x512xf32>
    %56 = vector.extract_strided_slice %55 {offsets = [0, 0], sizes = [8, 384], strides = [1, 1]} : vector<8x512xf32> to vector<8x384xf32>
    %57 = arith.negf %56 : vector<8x384xf32>
    %58 = math.exp %57 : vector<8x384xf32>
    %cst_22 = arith.constant 1.000000e+00 : f32
    %59 = vector.broadcast %cst_22 : f32 to vector<8x384xf32>
    %60 = arith.addf %59, %58 : vector<8x384xf32>
    %61 = arith.divf %59, %60 : vector<8x384xf32>
    %62 = vector.extract_strided_slice %61 {offsets = [0, 0], sizes = [8, 128], strides = [1, 1]} : vector<8x384xf32> to vector<8x128xf32>
    %63 = vector.extract_strided_slice %61 {offsets = [0, 128], sizes = [8, 128], strides = [1, 1]} : vector<8x384xf32> to vector<8x128xf32>
    %64 = vector.extract_strided_slice %61 {offsets = [0, 256], sizes = [8, 128], strides = [1, 1]} : vector<8x384xf32> to vector<8x128xf32>
    %65 = vector.extract_strided_slice %55 {offsets = [0, 384], sizes = [8, 128], strides = [1, 1]} : vector<8x512xf32> to vector<8x128xf32>
    %66 = math.tanh %65 : vector<8x128xf32>
    %67 = arith.mulf %63, %49 : vector<8x128xf32>
    %68 = arith.mulf %62, %66 : vector<8x128xf32>
    %69 = arith.addf %67, %68 : vector<8x128xf32>
    %70 = math.tanh %69 : vector<8x128xf32>
    %71 = arith.mulf %64, %70 : vector<8x128xf32>
    %c0_23 = arith.constant 0 : index
    %c0_24 = arith.constant 0 : index
    %72 = vector.load %arg3[%c0_23, %c0_24] : memref<128x512xf32, #tpu.memory_space<vmem>>, vector<128x512xf32>
    %cst_25 = arith.constant dense<0.000000e+00> : vector<8x512xf32>
    %73 = tpu.matmul %71, %72, %cst_25 {dimension_numbers = #tpu.dot_dimension_numbers<[1], [0], [0], [1], [0, 0, 1, 1], [], []>} : vector<8x128xf32>, vector<128x512xf32>, vector<8x512xf32> -> vector<8x512xf32>
    %c24 = arith.constant 24 : index
    %c0_26 = arith.constant 0 : index
    %74 = vector.load %arg7[%c24, %c0_26] : memref<64x512xf32, #tpu.memory_space<vmem>>, vector<8x512xf32>
    %75 = arith.addf %73, %74 : vector<8x512xf32>
    %76 = vector.extract_strided_slice %75 {offsets = [0, 0], sizes = [8, 384], strides = [1, 1]} : vector<8x512xf32> to vector<8x384xf32>
    %77 = arith.negf %76 : vector<8x384xf32>
    %78 = math.exp %77 : vector<8x384xf32>
    %cst_27 = arith.constant 1.000000e+00 : f32
    %79 = vector.broadcast %cst_27 : f32 to vector<8x384xf32>
    %80 = arith.addf %79, %78 : vector<8x384xf32>
    %81 = arith.divf %79, %80 : vector<8x384xf32>
    %82 = vector.extract_strided_slice %81 {offsets = [0, 0], sizes = [8, 128], strides = [1, 1]} : vector<8x384xf32> to vector<8x128xf32>
    %83 = vector.extract_strided_slice %81 {offsets = [0, 128], sizes = [8, 128], strides = [1, 1]} : vector<8x384xf32> to vector<8x128xf32>
    %84 = vector.extract_strided_slice %81 {offsets = [0, 256], sizes = [8, 128], strides = [1, 1]} : vector<8x384xf32> to vector<8x128xf32>
    %85 = vector.extract_strided_slice %75 {offsets = [0, 384], sizes = [8, 128], strides = [1, 1]} : vector<8x512xf32> to vector<8x128xf32>
    %86 = math.tanh %85 : vector<8x128xf32>
    %87 = arith.mulf %83, %69 : vector<8x128xf32>
    %88 = arith.mulf %82, %86 : vector<8x128xf32>
    %89 = arith.addf %87, %88 : vector<8x128xf32>
    %90 = math.tanh %89 : vector<8x128xf32>
    %91 = arith.mulf %84, %90 : vector<8x128xf32>
    %c0_28 = arith.constant 0 : index
    %c0_29 = arith.constant 0 : index
    %92 = vector.load %arg3[%c0_28, %c0_29] : memref<128x512xf32, #tpu.memory_space<vmem>>, vector<128x512xf32>
    %cst_30 = arith.constant dense<0.000000e+00> : vector<8x512xf32>
    %93 = tpu.matmul %91, %92, %cst_30 {dimension_numbers = #tpu.dot_dimension_numbers<[1], [0], [0], [1], [0, 0, 1, 1], [], []>} : vector<8x128xf32>, vector<128x512xf32>, vector<8x512xf32> -> vector<8x512xf32>
    %c32 = arith.constant 32 : index
    %c0_31 = arith.constant 0 : index
    %94 = vector.load %arg7[%c32, %c0_31] : memref<64x512xf32, #tpu.memory_space<vmem>>, vector<8x512xf32>
    %95 = arith.addf %93, %94 : vector<8x512xf32>
    %96 = vector.extract_strided_slice %95 {offsets = [0, 0], sizes = [8, 384], strides = [1, 1]} : vector<8x512xf32> to vector<8x384xf32>
    %97 = arith.negf %96 : vector<8x384xf32>
    %98 = math.exp %97 : vector<8x384xf32>
    %cst_32 = arith.constant 1.000000e+00 : f32
    %99 = vector.broadcast %cst_32 : f32 to vector<8x384xf32>
    %100 = arith.addf %99, %98 : vector<8x384xf32>
    %101 = arith.divf %99, %100 : vector<8x384xf32>
    %102 = vector.extract_strided_slice %101 {offsets = [0, 0], sizes = [8, 128], strides = [1, 1]} : vector<8x384xf32> to vector<8x128xf32>
    %103 = vector.extract_strided_slice %101 {offsets = [0, 128], sizes = [8, 128], strides = [1, 1]} : vector<8x384xf32> to vector<8x128xf32>
    %104 = vector.extract_strided_slice %101 {offsets = [0, 256], sizes = [8, 128], strides = [1, 1]} : vector<8x384xf32> to vector<8x128xf32>
    %105 = vector.extract_strided_slice %95 {offsets = [0, 384], sizes = [8, 128], strides = [1, 1]} : vector<8x512xf32> to vector<8x128xf32>
    %106 = math.tanh %105 : vector<8x128xf32>
    %107 = arith.mulf %103, %89 : vector<8x128xf32>
    %108 = arith.mulf %102, %106 : vector<8x128xf32>
    %109 = arith.addf %107, %108 : vector<8x128xf32>
    %110 = math.tanh %109 : vector<8x128xf32>
    %111 = arith.mulf %104, %110 : vector<8x128xf32>
    %c0_33 = arith.constant 0 : index
    %c0_34 = arith.constant 0 : index
    %112 = vector.load %arg3[%c0_33, %c0_34] : memref<128x512xf32, #tpu.memory_space<vmem>>, vector<128x512xf32>
    %cst_35 = arith.constant dense<0.000000e+00> : vector<8x512xf32>
    %113 = tpu.matmul %111, %112, %cst_35 {dimension_numbers = #tpu.dot_dimension_numbers<[1], [0], [0], [1], [0, 0, 1, 1], [], []>} : vector<8x128xf32>, vector<128x512xf32>, vector<8x512xf32> -> vector<8x512xf32>
    %c40 = arith.constant 40 : index
    %c0_36 = arith.constant 0 : index
    %114 = vector.load %arg7[%c40, %c0_36] : memref<64x512xf32, #tpu.memory_space<vmem>>, vector<8x512xf32>
    %115 = arith.addf %113, %114 : vector<8x512xf32>
    %116 = vector.extract_strided_slice %115 {offsets = [0, 0], sizes = [8, 384], strides = [1, 1]} : vector<8x512xf32> to vector<8x384xf32>
    %117 = arith.negf %116 : vector<8x384xf32>
    %118 = math.exp %117 : vector<8x384xf32>
    %cst_37 = arith.constant 1.000000e+00 : f32
    %119 = vector.broadcast %cst_37 : f32 to vector<8x384xf32>
    %120 = arith.addf %119, %118 : vector<8x384xf32>
    %121 = arith.divf %119, %120 : vector<8x384xf32>
    %122 = vector.extract_strided_slice %121 {offsets = [0, 0], sizes = [8, 128], strides = [1, 1]} : vector<8x384xf32> to vector<8x128xf32>
    %123 = vector.extract_strided_slice %121 {offsets = [0, 128], sizes = [8, 128], strides = [1, 1]} : vector<8x384xf32> to vector<8x128xf32>
    %124 = vector.extract_strided_slice %121 {offsets = [0, 256], sizes = [8, 128], strides = [1, 1]} : vector<8x384xf32> to vector<8x128xf32>
    %125 = vector.extract_strided_slice %115 {offsets = [0, 384], sizes = [8, 128], strides = [1, 1]} : vector<8x512xf32> to vector<8x128xf32>
    %126 = math.tanh %125 : vector<8x128xf32>
    %127 = arith.mulf %123, %109 : vector<8x128xf32>
    %128 = arith.mulf %122, %126 : vector<8x128xf32>
    %129 = arith.addf %127, %128 : vector<8x128xf32>
    %130 = math.tanh %129 : vector<8x128xf32>
    %131 = arith.mulf %124, %130 : vector<8x128xf32>
    %c0_38 = arith.constant 0 : index
    %c0_39 = arith.constant 0 : index
    %132 = vector.load %arg3[%c0_38, %c0_39] : memref<128x512xf32, #tpu.memory_space<vmem>>, vector<128x512xf32>
    %cst_40 = arith.constant dense<0.000000e+00> : vector<8x512xf32>
    %133 = tpu.matmul %131, %132, %cst_40 {dimension_numbers = #tpu.dot_dimension_numbers<[1], [0], [0], [1], [0, 0, 1, 1], [], []>} : vector<8x128xf32>, vector<128x512xf32>, vector<8x512xf32> -> vector<8x512xf32>
    %c48 = arith.constant 48 : index
    %c0_41 = arith.constant 0 : index
    %134 = vector.load %arg7[%c48, %c0_41] : memref<64x512xf32, #tpu.memory_space<vmem>>, vector<8x512xf32>
    %135 = arith.addf %133, %134 : vector<8x512xf32>
    %136 = vector.extract_strided_slice %135 {offsets = [0, 0], sizes = [8, 384], strides = [1, 1]} : vector<8x512xf32> to vector<8x384xf32>
    %137 = arith.negf %136 : vector<8x384xf32>
    %138 = math.exp %137 : vector<8x384xf32>
    %cst_42 = arith.constant 1.000000e+00 : f32
    %139 = vector.broadcast %cst_42 : f32 to vector<8x384xf32>
    %140 = arith.addf %139, %138 : vector<8x384xf32>
    %141 = arith.divf %139, %140 : vector<8x384xf32>
    %142 = vector.extract_strided_slice %141 {offsets = [0, 0], sizes = [8, 128], strides = [1, 1]} : vector<8x384xf32> to vector<8x128xf32>
    %143 = vector.extract_strided_slice %141 {offsets = [0, 128], sizes = [8, 128], strides = [1, 1]} : vector<8x384xf32> to vector<8x128xf32>
    %144 = vector.extract_strided_slice %141 {offsets = [0, 256], sizes = [8, 128], strides = [1, 1]} : vector<8x384xf32> to vector<8x128xf32>
    %145 = vector.extract_strided_slice %135 {offsets = [0, 384], sizes = [8, 128], strides = [1, 1]} : vector<8x512xf32> to vector<8x128xf32>
    %146 = math.tanh %145 : vector<8x128xf32>
    %147 = arith.mulf %143, %129 : vector<8x128xf32>
    %148 = arith.mulf %142, %146 : vector<8x128xf32>
    %149 = arith.addf %147, %148 : vector<8x128xf32>
    %150 = math.tanh %149 : vector<8x128xf32>
    %151 = arith.mulf %144, %150 : vector<8x128xf32>
    %c0_43 = arith.constant 0 : index
    %c0_44 = arith.constant 0 : index
    %152 = vector.load %arg3[%c0_43, %c0_44] : memref<128x512xf32, #tpu.memory_space<vmem>>, vector<128x512xf32>
    %cst_45 = arith.constant dense<0.000000e+00> : vector<8x512xf32>
    %153 = tpu.matmul %151, %152, %cst_45 {dimension_numbers = #tpu.dot_dimension_numbers<[1], [0], [0], [1], [0, 0, 1, 1], [], []>} : vector<8x128xf32>, vector<128x512xf32>, vector<8x512xf32> -> vector<8x512xf32>
    %c56 = arith.constant 56 : index
    %c0_46 = arith.constant 0 : index
    %154 = vector.load %arg7[%c56, %c0_46] : memref<64x512xf32, #tpu.memory_space<vmem>>, vector<8x512xf32>
    %155 = arith.addf %153, %154 : vector<8x512xf32>
    %156 = vector.extract_strided_slice %155 {offsets = [0, 0], sizes = [8, 384], strides = [1, 1]} : vector<8x512xf32> to vector<8x384xf32>
    %157 = arith.negf %156 : vector<8x384xf32>
    %158 = math.exp %157 : vector<8x384xf32>
    %cst_47 = arith.constant 1.000000e+00 : f32
    %159 = vector.broadcast %cst_47 : f32 to vector<8x384xf32>
    %160 = arith.addf %159, %158 : vector<8x384xf32>
    %161 = arith.divf %159, %160 : vector<8x384xf32>
    %162 = vector.extract_strided_slice %161 {offsets = [0, 0], sizes = [8, 128], strides = [1, 1]} : vector<8x384xf32> to vector<8x128xf32>
    %163 = vector.extract_strided_slice %161 {offsets = [0, 128], sizes = [8, 128], strides = [1, 1]} : vector<8x384xf32> to vector<8x128xf32>
    %164 = vector.extract_strided_slice %161 {offsets = [0, 256], sizes = [8, 128], strides = [1, 1]} : vector<8x384xf32> to vector<8x128xf32>
    %165 = vector.extract_strided_slice %155 {offsets = [0, 384], sizes = [8, 128], strides = [1, 1]} : vector<8x512xf32> to vector<8x128xf32>
    %166 = math.tanh %165 : vector<8x128xf32>
    %167 = arith.mulf %163, %149 : vector<8x128xf32>
    %168 = arith.mulf %162, %166 : vector<8x128xf32>
    %169 = arith.addf %167, %168 : vector<8x128xf32>
    %170 = math.tanh %169 : vector<8x128xf32>
    %171 = arith.mulf %164, %170 : vector<8x128xf32>
    %c0_48 = arith.constant 0 : index
    %c0_49 = arith.constant 0 : index
    %172 = vector.load %arg3[%c0_48, %c0_49] : memref<128x512xf32, #tpu.memory_space<vmem>>, vector<128x512xf32>
    %cst_50 = arith.constant dense<0.000000e+00> : vector<8x512xf32>
    %173 = tpu.matmul %171, %172, %cst_50 {dimension_numbers = #tpu.dot_dimension_numbers<[1], [0], [0], [1], [0, 0, 1, 1], [], []>} : vector<8x128xf32>, vector<128x512xf32>, vector<8x512xf32> -> vector<8x512xf32>
    %c56_51 = arith.constant 56 : index
    %c0_52 = arith.constant 0 : index
    %174 = vector.load %arg7[%c56_51, %c0_52] : memref<64x512xf32, #tpu.memory_space<vmem>>, vector<8x512xf32>
    %175 = arith.addf %173, %174 : vector<8x512xf32>
    %176 = vector.extract_strided_slice %175 {offsets = [0, 0], sizes = [8, 384], strides = [1, 1]} : vector<8x512xf32> to vector<8x384xf32>
    %177 = arith.negf %176 : vector<8x384xf32>
    %178 = math.exp %177 : vector<8x384xf32>
    %cst_53 = arith.constant 1.000000e+00 : f32
    %179 = vector.broadcast %cst_53 : f32 to vector<8x384xf32>
    %180 = arith.addf %179, %178 : vector<8x384xf32>
    %181 = arith.divf %179, %180 : vector<8x384xf32>
    %182 = vector.extract_strided_slice %181 {offsets = [0, 0], sizes = [8, 128], strides = [1, 1]} : vector<8x384xf32> to vector<8x128xf32>
    %183 = vector.extract_strided_slice %181 {offsets = [0, 128], sizes = [8, 128], strides = [1, 1]} : vector<8x384xf32> to vector<8x128xf32>
    %184 = vector.extract_strided_slice %181 {offsets = [0, 256], sizes = [8, 128], strides = [1, 1]} : vector<8x384xf32> to vector<8x128xf32>
    %185 = vector.extract_strided_slice %175 {offsets = [0, 384], sizes = [8, 128], strides = [1, 1]} : vector<8x512xf32> to vector<8x128xf32>
    %186 = math.tanh %185 : vector<8x128xf32>
    %187 = arith.mulf %183, %169 : vector<8x128xf32>
    %188 = arith.mulf %182, %186 : vector<8x128xf32>
    %189 = arith.addf %187, %188 : vector<8x128xf32>
    %190 = math.tanh %189 : vector<8x128xf32>
    %191 = arith.mulf %184, %190 : vector<8x128xf32>
    %c0_54 = arith.constant 0 : index
    %c0_55 = arith.constant 0 : index
    %192 = vector.load %arg4[%c0_54, %c0_55] : memref<128x6xf32, #tpu.memory_space<vmem>>, vector<128x6xf32>
    %cst_56 = arith.constant dense<0.000000e+00> : vector<8x6xf32>
    %193 = tpu.matmul %191, %192, %cst_56 {dimension_numbers = #tpu.dot_dimension_numbers<[1], [0], [0], [1], [0, 0, 1, 1], [], []>} : vector<8x128xf32>, vector<128x6xf32>, vector<8x6xf32> -> vector<8x6xf32>
    %c0_57 = arith.constant 0 : index
    %c0_58 = arith.constant 0 : index
    %194 = vector.load %arg5[%c0_57, %c0_58] : memref<1x6xf32, #tpu.memory_space<vmem>>, vector<1x6xf32>
    %195 = vector.broadcast %194 : vector<1x6xf32> to vector<8x6xf32>
    %196 = arith.addf %193, %195 : vector<8x6xf32>
    %c0_59 = arith.constant 0 : index
    %c0_60 = arith.constant 0 : index
    %197 = vector.load %arg6[%c0_59, %c0_60] : memref<8x6xf32, #tpu.memory_space<vmem>>, vector<8x6xf32>
    tpu.vector_store %arg6[%c0_59, %c0_60], %196 {strides = array<i32>} : memref<8x6xf32, #tpu.memory_space<vmem>>, vector<8x6xf32>,
    return
  }
}

</mosaic_0001>

<llo_original>
// kernel: lstm_model_forward.1
$region0: #{lstm_model_forward.1}
  #allocation0 [shape = 'u32[]', space=smem, size = 0x4, offset = 0x4, fixed_abs, tag = 'smem constant byte address 0x4 - core index']
  #allocation1 [shape = 'u32[144,128]{1,0:T(1,128)}', space=vmem, size = 0x12000, scoped, tag = 'internal scratch']
  #allocation2 [shape = 'f32[64,512]{1,0:T(8,128)}', space=vmem, size = 0x20000, scoped, tag = 'scratch operand']
  %s0 = inlined_call_operand.vmem [shape: f32[64,5], index: 0, kind: input, shape index: {}]
  %s1 = inlined_call_operand.vmem [shape: f32[5,512], index: 1, kind: input, shape index: {}]
  %s2 = inlined_call_operand.vmem [shape: f32[1,512], index: 2, kind: input, shape index: {}]
  %s3 = inlined_call_operand.hbm [shape: f32[128,512], index: 3, kind: input, shape index: {}]
  %s4 = inlined_call_operand.vmem [shape: f32[128,6], index: 4, kind: input, shape index: {}]
  %s5 = inlined_call_operand.vmem [shape: f32[1,6], index: 5, kind: input, shape index: {}]
  %s6 = inlined_call_operand.hbm [shape: f32[8,6], index: 6, kind: output, shape index: {}]
  %s7 = sld [smem:[#allocation0]]
  $region38: #{lstm_model_forward.1} parent=0
    _
  %s9 = ssub.s32 1, %s7
  %s10 = scalar_select 0, %s9, %s7
  $region1: #{lstm_model_forward.1} parent=0
    #allocation3 [shape = 'u8[262144]{0}', space=vmem, size = 0x40000, scoped, tag = 'input window, operand 3, single buffered']
    #allocation4 [shape = 's32[1]{0}', space=sflag, size = 0x4, scoped, tag = 'scoped memory for lstm_model_forward.1']
    #allocation5 [shape = 's32[1]{0}', space=sflag, size = 0x4, scoped, tag = 'scoped memory for lstm_model_forward.1']
    #allocation6 [shape = 'u8[4096]{0}', space=vmem, size = 0x1000, scoped, tag = 'output window, operand 0, single buffered']
    %11 = vsyncpa [#allocation4], 0
    %12 = vsyncpa [#allocation5], 0
    // Predicated region
    $region2: #{lstm_model_forward.1} parent=1 // pred_check
      _
    $region3: #{lstm_model_forward.1} parent=1 // pred_check_branch
      %14 = sbr.rel (0) target = $region5
    $region4: #{lstm_model_forward.1} parent=1 // pred_region
      _
    $region5: #{lstm_model_forward.1} parent=1 // pred_fallthru
      _
    // Predicated region
    $region6: #{lstm_model_forward.1} parent=1 // pred_check
      _
    $region7: #{lstm_model_forward.1} parent=1 // pred_check_branch
      %16 = sbr.rel (0) target = $region9
    $region8: #{lstm_model_forward.1} parent=1 // pred_region
      _
    $region9: #{lstm_model_forward.1} parent=1 // pred_fallthru
      _
    // Predicated region
    $region10: #{lstm_model_forward.1} parent=1 // pred_check
      _
    $region11: #{lstm_model_forward.1} parent=1 // pred_check_branch
      %18 = sbr.rel (0) target = $region13
    $region12: #{lstm_model_forward.1} parent=1 // pred_region
      _
    $region13: #{lstm_model_forward.1} parent=1 // pred_fallthru
      _
    // Predicated region
    $region14: #{lstm_model_forward.1} parent=1 // pred_check
      _
    $region15: #{lstm_model_forward.1} parent=1 // pred_check_branch
      %20 = sbr.rel (0) target = $region17
    $region16: #{lstm_model_forward.1} parent=1 // pred_region
      %s22 = ssub.s32 8192, 8192
      %23 = vsyncadd [#allocation4], %s22
      %s24 = sshll.u32 [#allocation3], 4
      %s25 = int_to_ptr.vmem [resolvable:$true] %s24
      %30 = dma.hbm_to_vmem [thread:$0]  %s3, 8192, %s25, [#allocation4], 512, 512, 32
    $region17: #{lstm_model_forward.1} parent=1 // pred_fallthru
      _
    // Predicated region
    $region18: #{lstm_model_forward.1} parent=1 // pred_check
      _
    $region19: #{lstm_model_forward.1} parent=1 // pred_check_branch
      %32 = sbr.rel (0) target = $region21
    $region20: #{lstm_model_forward.1} parent=1 // pred_region
      _
    $region21: #{lstm_model_forward.1} parent=1 // pred_fallthru
      _
    // Predicated region
    $region22: #{lstm_model_forward.1} parent=1 // pred_check
      _
    $region23: #{lstm_model_forward.1} parent=1 // pred_check_branch
      %34 = sbr.rel (0) target = $region25
    $region24: #{lstm_model_forward.1} parent=1 // pred_region
      _
    $region25: #{lstm_model_forward.1} parent=1 // pred_fallthru
      _
    // Predicated region
    $region26: #{lstm_model_forward.1} parent=1 // pred_check
      _
    $region27: #{lstm_model_forward.1} parent=1 // pred_check_branch
      %36 = sbr.rel (0) target = $region29
    $region28: #{lstm_model_forward.1} parent=1 // pred_region
      %37 = dma.done [#allocation4], 8192
    $region29: #{lstm_model_forward.1} parent=1 // pred_fallthru
      _
    %v38 = vld [vmem:[%s0] sm:$0xff]
    %v39 = vld [vmem:[%s0 + $0x8] sm:$0xff]
    %v40 = vld [vmem:[%s0 + $0x10] sm:$0xff]
    %v41 = vld [vmem:[%s0 + $0x18] sm:$0xff]
    %v42 = vld [vmem:[%s0 + $0x20] sm:$0xff]
    %v43 = vld [vmem:[%s0 + $0x28] sm:$0xff]
    %v44 = vld [vmem:[%s0 + $0x30] sm:$0xff]
    %v45 = vld [vmem:[%s0 + $0x38] sm:$0xff]
    %v46 = vld [vmem:[%s1] sm:$0x1f]
    %v47 = vld [vmem:[%s1 + $0x8] sm:$0x1f]
    %v48 = vld [vmem:[%s1 + $0x10] sm:$0x1f]
    %v49 = vld [vmem:[%s1 + $0x18] sm:$0x1f]
    %v50 = vld [vmem:[%s2] sm:$0xf]
    %v52 = vlaneseq
    %v53 = vshrl.u32 %v52, 7
    %v54 = vsub.s32 0, %v53
    %v55 = vrot.slane %v50, %v54
    %v56 = vlaneseq
    %v57 = vshrl.u32 %v56, 7
    %v58 = vsub.s32 1, %v57
    %v59 = vrot.slane %v50, %v58
    %v60 = vlaneseq
    %v61 = vshrl.u32 %v60, 7
    %v62 = vsub.s32 2, %v61
    %v63 = vrot.slane %v50, %v62
    %v64 = vlaneseq
    %v65 = vshrl.u32 %v64, 7
    %v66 = vsub.s32 3, %v65
    %v67 = vrot.slane %v50, %v66
    %vm72 = vcmask 39936
    %v74 = vsel %vm72, %v38, 0
    %v77 = vsel %vm72, %v39, 0
    %v80 = vsel %vm72, %v40, 0
    %v83 = vsel %vm72, %v41, 0
    %v86 = vsel %vm72, %v42, 0
    %v89 = vsel %vm72, %v43, 0
    %v92 = vsel %vm72, %v44, 0
    %v95 = vsel %vm72, %v45, 0
    %vm97 = vcmask 1044480
    %v99 = vsel %vm97, %v46, 0
    %v102 = vsel %vm97, %v47, 0
    %v105 = vsel %vm97, %v48, 0
    %v108 = vsel %vm97, %v49, 0
    %110 = vmatprep.subr.mxu0 0.0
    %111 = vmatpush1.msra.mxu0 0.0
    %112 = vmatprep.subr.mxu0 0.0
    %113 = vmatpush1.msra.mxu0 0.0
    %114 = vmatprep.subr.mxu0 0.0
    %115 = vmatpush1.msra.mxu0 0.0
    %116 = vmatprep.subr.mxu0 0.0
    %117 = vmatpush1.msra.mxu0 0.0
    %118 = vmatprep.subr.mxu0 0.0
    %119 = vmatpush1.msra.mxu0 0.0
    %120 = vmatprep.subr.mxu0 0.0
    %121 = vmatpush1.msra.mxu0 0.0
    %122 = vmatprep.subr.mxu0 0.0
    %123 = vmatpush1.msra.mxu0 0.0
    %124 = vmatprep.subr.mxu0 0.0
    %125 = vmatpush1.msra.mxu0 0.0
    %126 = vmatprep.subr.mxu0 0.0
    %127 = vmatpush1.msra.mxu0 0.0
    %128 = vmatprep.subr.mxu0 0.0
    %129 = vmatpush1.msra.mxu0 0.0
    %130 = vmatprep.subr.mxu0 0.0
    %131 = vmatpush1.msra.mxu0 0.0
    %132 = vmatprep.subr.mxu0 0.0
    %133 = vmatpush1.msra.mxu0 0.0
    %134 = vmatprep.subr.mxu0 0.0
    %135 = vmatpush1.msra.mxu0 0.0
    %136 = vmatprep.subr.mxu0 0.0
    %137 = vmatpush1.msra.mxu0 0.0
    %138 = vmatprep.subr.mxu0 0.0
    %139 = vmatpush1.msra.mxu0 0.0
    %140 = vmatprep.subr.mxu0 %v102
    %141 = vmatpush1.msra.mxu0 %v99
    %142 = vmatprep.subr.mxu0 0.0
    %143 = vmatpush2.msra.mxu0 0.0
    %144 = vmatprep.subr.mxu0 0.0
    %145 = vmatpush2.msra.mxu0 0.0
    %146 = vmatprep.subr.mxu0 0.0
    %147 = vmatpush2.msra.mxu0 0.0
    %148 = vmatprep.subr.mxu0 0.0
    %149 = vmatpush2.msra.mxu0 0.0
    %150 = vmatprep.subr.mxu0 0.0
    %151 = vmatpush2.msra.mxu0 0.0
    %152 = vmatprep.subr.mxu0 0.0
    %153 = vmatpush2.msra.mxu0 0.0
    %154 = vmatprep.subr.mxu0 0.0
    %155 = vmatpush2.msra.mxu0 0.0
    %156 = vmatprep.subr.mxu0 0.0
    %157 = vmatpush2.msra.mxu0 0.0
    %158 = vmatprep.subr.mxu0 0.0
    %159 = vmatpush2.msra.mxu0 0.0
    %160 = vmatprep.subr.mxu0 0.0
    %161 = vmatpush2.msra.mxu0 0.0
    %162 = vmatprep.subr.mxu0 0.0
    %163 = vmatpush2.msra.mxu0 0.0
    %164 = vmatprep.subr.mxu0 0.0
    %165 = vmatpush2.msra.mxu0 0.0
    %166 = vmatprep.subr.mxu0 0.0
    %167 = vmatpush2.msra.mxu0 0.0
    %168 = vmatprep.subr.mxu0 0.0
    %169 = vmatpush2.msra.mxu0 0.0
    %170 = vmatprep.subr.mxu0 0.0
    %171 = vmatpush2.msra.mxu0 0.0
    %172 = vmatprep.subr.mxu0 0.0
    %173 = vmatpush2.msra.mxu0 0.0
    %174 = vmatprep.mubr.f32.mxu0 0.0
    %175 = vmatmul.mubr.f32.gmra.mxu0 %v74
    %v176 = vpop.f32.mrf.mxu0
    %v177 = vadd.f32 %v55, %v176
    %v178 = vpop.f32.mrf.mxu0
    %v179 = vadd.f32 %v59, %v178
    %180 = vmatprep.mubr.f32.mxu0 0.0
    %181 = vmatmul.mubr.f32.gmra.mxu0 %v77
    %v182 = vpop.f32.mrf.mxu0
    %v183 = vadd.f32 %v55, %v182
    %v184 = vpop.f32.mrf.mxu0
    %v185 = vadd.f32 %v59, %v184
    %186 = vmatprep.mubr.f32.mxu0 0.0
    %187 = vmatmul.mubr.f32.gmra.mxu0 %v80
    %v188 = vpop.f32.mrf.mxu0
    %v189 = vadd.f32 %v55, %v188
    %v190 = vpop.f32.mrf.mxu0
    %v191 = vadd.f32 %v59, %v190
    %192 = vmatprep.mubr.f32.mxu0 0.0
    %193 = vmatmul.mubr.f32.gmra.mxu0 %v83
    %v194 = vpop.f32.mrf.mxu0
    %v195 = vadd.f32 %v55, %v194
    %v196 = vpop.f32.mrf.mxu0
    %v197 = vadd.f32 %v59, %v196
    %198 = vmatprep.mubr.f32.mxu0 0.0
    %199 = vmatmul.mubr.f32.gmra.mxu0 %v86
    %v200 = vpop.f32.mrf.mxu0
    %v201 = vadd.f32 %v55, %v200
    %v202 = vpop.f32.mrf.mxu0
    %v203 = vadd.f32 %v59, %v202
    %204 = vmatprep.mubr.f32.mxu0 0.0
    %205 = vmatmul.mubr.f32.gmra.mxu0 %v89
    %v206 = vpop.f32.mrf.mxu0
    %v207 = vadd.f32 %v55, %v206
    %v208 = vpop.f32.mrf.mxu0
    %v209 = vadd.f32 %v59, %v208
    %210 = vmatprep.mubr.f32.mxu0 0.0
    %211 = vmatmul.mubr.f32.gmra.mxu0 %v92
    %v212 = vpop.f32.mrf.mxu0
    %v213 = vadd.f32 %v55, %v212
    %v214 = vpop.f32.mrf.mxu0
    %v215 = vadd.f32 %v59, %v214
    %216 = vmatprep.mubr.f32.mxu0 0.0
    %217 = vmatmul.mubr.f32.gmra.mxu0 %v95
    %v218 = vpop.f32.mrf.mxu0
    %v219 = vadd.f32 %v55, %v218
    %v220 = vpop.f32.mrf.mxu0
    %v221 = vadd.f32 %v59, %v220
    %222 = vdwg.mxu0
    %223 = vmatprep.subr.mxu0 0.0
    %224 = vmatpush1.msra.mxu0 0.0
    %225 = vmatprep.subr.mxu0 0.0
    %226 = vmatpush1.msra.mxu0 0.0
    %227 = vmatprep.subr.mxu0 0.0
    %228 = vmatpush1.msra.mxu0 0.0
    %229 = vmatprep.subr.mxu0 0.0
    %230 = vmatpush1.msra.mxu0 0.0
    %231 = vmatprep.subr.mxu0 0.0
    %232 = vmatpush1.msra.mxu0 0.0
    %233 = vmatprep.subr.mxu0 0.0
    %234 = vmatpush1.msra.mxu0 0.0
    %235 = vmatprep.subr.mxu0 0.0
    %236 = vmatpush1.msra.mxu0 0.0
    %237 = vmatprep.subr.mxu0 0.0
    %238 = vmatpush1.msra.mxu0 0.0
    %239 = vmatprep.subr.mxu0 0.0
    %240 = vmatpush1.msra.mxu0 0.0
    %241 = vmatprep.subr.mxu0 0.0
    %242 = vmatpush1.msra.mxu0 0.0
    %243 = vmatprep.subr.mxu0 0.0
    %244 = vmatpush1.msra.mxu0 0.0
    %245 = vmatprep.subr.mxu0 0.0
    %246 = vmatpush1.msra.mxu0 0.0
    %247 = vmatprep.subr.mxu0 0.0
    %248 = vmatpush1.msra.mxu0 0.0
    %249 = vmatprep.subr.mxu0 0.0
    %250 = vmatpush1.msra.mxu0 0.0
    %251 = vmatprep.subr.mxu0 0.0
    %252 = vmatpush1.msra.mxu0 0.0
    %253 = vmatprep.subr.mxu0 %v108
    %254 = vmatpush1.msra.mxu0 %v105
    %255 = vmatprep.subr.mxu0 0.0
    %256 = vmatpush2.msra.mxu0 0.0
    %257 = vmatprep.subr.mxu0 0.0
    %258 = vmatpush2.msra.mxu0 0.0
    %259 = vmatprep.subr.mxu0 0.0
    %260 = vmatpush2.msra.mxu0 0.0
    %261 = vmatprep.subr.mxu0 0.0
    %262 = vmatpush2.msra.mxu0 0.0
    %263 = vmatprep.subr.mxu0 0.0
    %264 = vmatpush2.msra.mxu0 0.0
    %265 = vmatprep.subr.mxu0 0.0
    %266 = vmatpush2.msra.mxu0 0.0
    %267 = vmatprep.subr.mxu0 0.0
    %268 = vmatpush2.msra.mxu0 0.0
    %269 = vmatprep.subr.mxu0 0.0
    %270 = vmatpush2.msra.mxu0 0.0
    %271 = vmatprep.subr.mxu0 0.0
    %272 = vmatpush2.msra.mxu0 0.0
    %273 = vmatprep.subr.mxu0 0.0
    %274 = vmatpush2.msra.mxu0 0.0
    %275 = vmatprep.subr.mxu0 0.0
    %276 = vmatpush2.msra.mxu0 0.0
    %277 = vmatprep.subr.mxu0 0.0
    %278 = vmatpush2.msra.mxu0 0.0
    %279 = vmatprep.subr.mxu0 0.0
    %280 = vmatpush2.msra.mxu0 0.0
    %281 = vmatprep.subr.mxu0 0.0
    %282 = vmatpush2.msra.mxu0 0.0
    %283 = vmatprep.subr.mxu0 0.0
    %284 = vmatpush2.msra.mxu0 0.0
    %285 = vmatprep.subr.mxu0 0.0
    %286 = vmatpush2.msra.mxu0 0.0
    %287 = vmatprep.mubr.f32.mxu0 0.0
    %288 = vmatmul.mubr.f32.gmra.mxu0 %v74
    %v289 = vpop.f32.mrf.mxu0
    %v290 = vadd.f32 %v63, %v289
    %v291 = vpop.f32.mrf.mxu0
    %v292 = vadd.f32 %v67, %v291
    %293 = vmatprep.mubr.f32.mxu0 0.0
    %294 = vmatmul.mubr.f32.gmra.mxu0 %v77
    %v295 = vpop.f32.mrf.mxu0
    %v296 = vadd.f32 %v63, %v295
    %v297 = vpop.f32.mrf.mxu0
    %v298 = vadd.f32 %v67, %v297
    %299 = vmatprep.mubr.f32.mxu0 0.0
    %300 = vmatmul.mubr.f32.gmra.mxu0 %v80
    %v301 = vpop.f32.mrf.mxu0
    %v302 = vadd.f32 %v63, %v301
    %v303 = vpop.f32.mrf.mxu0
    %v304 = vadd.f32 %v67, %v303
    %305 = vmatprep.mubr.f32.mxu0 0.0
    %306 = vmatmul.mubr.f32.gmra.mxu0 %v83
    %v307 = vpop.f32.mrf.mxu0
    %v308 = vadd.f32 %v63, %v307
    %v309 = vpop.f32.mrf.mxu0
    %v310 = vadd.f32 %v67, %v309
    %311 = vmatprep.mubr.f32.mxu0 0.0
    %312 = vmatmul.mubr.f32.gmra.mxu0 %v86
    %v313 = vpop.f32.mrf.mxu0
    %v314 = vadd.f32 %v63, %v313
    %v315 = vpop.f32.mrf.mxu0
    %v316 = vadd.f32 %v67, %v315
    %317 = vmatprep.mubr.f32.mxu0 0.0
    %318 = vmatmul.mubr.f32.gmra.mxu0 %v89
    %v319 = vpop.f32.mrf.mxu0
    %v320 = vadd.f32 %v63, %v319
    %v321 = vpop.f32.mrf.mxu0
    %v322 = vadd.f32 %v67, %v321
    %323 = vmatprep.mubr.f32.mxu0 0.0
    %324 = vmatmul.mubr.f32.gmra.mxu0 %v92
    %v325 = vpop.f32.mrf.mxu0
    %v326 = vadd.f32 %v63, %v325
    %v327 = vpop.f32.mrf.mxu0
    %v328 = vadd.f32 %v67, %v327
    %329 = vmatprep.mubr.f32.mxu0 0.0
    %330 = vmatmul.mubr.f32.gmra.mxu0 %v95
    %v331 = vpop.f32.mrf.mxu0
    %v332 = vadd.f32 %v63, %v331
    %v333 = vpop.f32.mrf.mxu0
    %v334 = vadd.f32 %v67, %v333
    %335 = vdwg.mxu0
    %336 = vst [vmem:[#allocation2] sm:$0xff] %v177
    %337 = vst [vmem:[#allocation2 + $0x8] sm:$0xff] %v179
    %338 = vst [vmem:[#allocation2 + $0x10] sm:$0xff] %v290
    %339 = vst [vmem:[#allocation2 + $0x18] sm:$0xff] %v292
    %340 = vst [vmem:[#allocation2 + $0x20] sm:$0xff] %v183
    %341 = vst [vmem:[#allocation2 + $0x28] sm:$0xff] %v185
    %342 = vst [vmem:[#allocation2 + $0x30] sm:$0xff] %v296
    %343 = vst [vmem:[#allocation2 + $0x38] sm:$0xff] %v298
    %344 = vst [vmem:[#allocation2 + $0x40] sm:$0xff] %v189
    %345 = vst [vmem:[#allocation2 + $0x48] sm:$0xff] %v191
    %346 = vst [vmem:[#allocation2 + $0x50] sm:$0xff] %v302
    %347 = vst [vmem:[#allocation2 + $0x58] sm:$0xff] %v304
    %348 = vst [vmem:[#allocation2 + $0x60] sm:$0xff] %v195
    %349 = vst [vmem:[#allocation2 + $0x68] sm:$0xff] %v197
    %350 = vst [vmem:[#allocation2 + $0x70] sm:$0xff] %v308
    %351 = vst [vmem:[#allocation2 + $0x78] sm:$0xff] %v310
    %352 = vst [vmem:[#allocation2 + $0x80] sm:$0xff] %v201
    %353 = vst [vmem:[#allocation2 + $0x88] sm:$0xff] %v203
    %354 = vst [vmem:[#allocation2 + $0x90] sm:$0xff] %v314
    %355 = vst [vmem:[#allocation2 + $0x98] sm:$0xff] %v316
    %356 = vst [vmem:[#allocation2 + $0xa0] sm:$0xff] %v207
    %357 = vst [vmem:[#allocation2 + $0xa8] sm:$0xff] %v209
    %358 = vst [vmem:[#allocation2 + $0xb0] sm:$0xff] %v320
    %359 = vst [vmem:[#allocation2 + $0xb8] sm:$0xff] %v322
    %360 = vst [vmem:[#allocation2 + $0xc0] sm:$0xff] %v213
    %361 = vst [vmem:[#allocation2 + $0xc8] sm:$0xff] %v215
    %362 = vst [vmem:[#allocation2 + $0xd0] sm:$0xff] %v326
    %363 = vst [vmem:[#allocation2 + $0xd8] sm:$0xff] %v328
    %364 = vst [vmem:[#allocation2 + $0xe0] sm:$0xff] %v219
    %365 = vst [vmem:[#allocation2 + $0xe8] sm:$0xff] %v221
    %366 = vst [vmem:[#allocation2 + $0xf0] sm:$0xff] %v332
    %367 = vst [vmem:[#allocation2 + $0xf8] sm:$0xff] %v334
    %v368 = vld [vmem:[#allocation2] sm:$0xff]
    %v369 = vld [vmem:[#allocation2 + $0x8] sm:$0xff]
    %v370 = vld [vmem:[#allocation2 + $0x10] sm:$0xff]
    %v371 = vld [vmem:[#allocation2 + $0x18] sm:$0xff]
    %v372 = vxor.u32 %v368, 2147483648
    %v373 = vxor.u32 %v369, 2147483648
    %v374 = vxor.u32 %v370, 2147483648
    %v375 = vmul.f32 %v372, 1.442695
    %v376 = vpow.pop %v375
    %v377 = vmul.f32 %v373, 1.442695
    %v378 = vpow.pop %v377
    %v379 = vmul.f32 %v374, 1.442695
    %v380 = vpow.pop %v379
    %v381 = vadd.f32 %v376, 1.0
    %v382 = vadd.f32 %v378, 1.0
    %v383 = vadd.f32 %v380, 1.0
    %v384 = vrcp.pop %v381
    %v385 = vmul.f32 1.0, %v384
    %v386 = vrcp.pop %v382
    %v387 = vmul.f32 1.0, %v386
    %v388 = vrcp.pop %v383
    %v389 = vmul.f32 1.0, %v388
    %v390 = vtanh.pop %v371
    %v391 = vmul.f32 %v387, 0.0
    %v392 = vmul.f32 %v385, %v390
    %v393 = vadd.f32 %v391, %v392
    %v394 = vtanh.pop %v393
    %v395 = vmul.f32 %v389, %v394
    %v396 = vlaneseq
    %v397 = vand.u32 %v396, 127
    %vm398 = vcmp.lt.s32.totalorder %v397, 64
    %v399 = vsel %vm398, %v395, 0.0
    %v400 = vsel %vm398, %v393, 0.0
    %v401 = vld [vmem:[#allocation3] sm:$0xff]
    %v402 = vld [vmem:[#allocation3 + $0x8] sm:$0xff]
    %v403 = vld [vmem:[#allocation3 + $0x10] sm:$0xff]
    %v404 = vld [vmem:[#allocation3 + $0x18] sm:$0xff]
    %v405 = vld [vmem:[#allocation3 + $0x20] sm:$0xff]
    %v406 = vld [vmem:[#allocation3 + $0x28] sm:$0xff]
    %v407 = vld [vmem:[#allocation3 + $0x30] sm:$0xff]
    %v408 = vld [vmem:[#allocation3 + $0x38] sm:$0xff]
    %v409 = vld [vmem:[#allocation3 + $0x40] sm:$0xff]
    %v410 = vld [vmem:[#allocation3 + $0x48] sm:$0xff]
    %v411 = vld [vmem:[#allocation3 + $0x50] sm:$0xff]
    %v412 = vld [vmem:[#allocation3 + $0x58] sm:$0xff]
    %v413 = vld [vmem:[#allocation3 + $0x60] sm:$0xff]
    %v414 = vld [vmem:[#allocation3 + $0x68] sm:$0xff]
    %v415 = vld [vmem:[#allocation3 + $0x70] sm:$0xff]
    %v416 = vld [vmem:[#allocation3 + $0x78] sm:$0xff]
    %v417 = vld [vmem:[#allocation3 + $0x80] sm:$0xff]
    %v418 = vld [vmem:[#allocation3 + $0x88] sm:$0xff]
    %v419 = vld [vmem:[#allocation3 + $0x90] sm:$0xff]
    %v420 = vld [vmem:[#allocation3 + $0x98] sm:$0xff]
    %v421 = vld [vmem:[#allocation3 + $0xa0] sm:$0xff]
    %v422 = vld [vmem:[#allocation3 + $0xa8] sm:$0xff]
    %v423 = vld [vmem:[#allocation3 + $0xb0] sm:$0xff]
    %v424 = vld [vmem:[#allocation3 + $0xb8] sm:$0xff]
    %v425 = vld [vmem:[#allocation3 + $0xc0] sm:$0xff]
    %v426 = vld [vmem:[#allocation3 + $0xc8] sm:$0xff]
    %v427 = vld [vmem:[#allocation3 + $0xd0] sm:$0xff]
    %v428 = vld [vmem:[#allocation3 + $0xd8] sm:$0xff]
    %v429 = vld [vmem:[#allocation3 + $0xe0] sm:$0xff]
    %v430 = vld [vmem:[#allocation3 + $0xe8] sm:$0xff]
    %v431 = vld [vmem:[#allocation3 + $0xf0] sm:$0xff]
    %v432 = vld [vmem:[#allocation3 + $0xf8] sm:$0xff]
    %v433 = vld [vmem:[#allocation3 + $0x100] sm:$0xff]
    %v434 = vld [vmem:[#allocation3 + $0x108] sm:$0xff]
    %v435 = vld [vmem:[#allocation3 + $0x110] sm:$0xff]
    %v436 = vld [vmem:[#allocation3 + $0x118] sm:$0xff]
    %v437 = vld [vmem:[#allocation3 + $0x120] sm:$0xff]
    %v438 = vld [vmem:[#allocation3 + $0x128] sm:$0xff]
    %v439 = vld [vmem:[#allocation3 + $0x130] sm:$0xff]
    %v440 = vld [vmem:[#allocation3 + $0x138] sm:$0xff]
    %v441 = vld [vmem:[#allocation3 + $0x140] sm:$0xff]
    %v442 = vld [vmem:[#allocation3 + $0x148] sm:$0xff]
    %v443 = vld [vmem:[#allocation3 + $0x150] sm:$0xff]
    %v444 = vld [vmem:[#allocation3 + $0x158] sm:$0xff]
    %v445 = vld [vmem:[#allocation3 + $0x160] sm:$0xff]
    %v446 = vld [vmem:[#allocation3 + $0x168] sm:$0xff]
    %v447 = vld [vmem:[#allocation3 + $0x170] sm:$0xff]
    %v448 = vld [vmem:[#allocation3 + $0x178] sm:$0xff]
    %v449 = vld [vmem:[#allocation3 + $0x180] sm:$0xff]
    %v450 = vld [vmem:[#allocation3 + $0x188] sm:$0xff]
    %v451 = vld [vmem:[#allocation3 + $0x190] sm:$0xff]
    %v452 = vld [vmem:[#allocation3 + $0x198] sm:$0xff]
    %v453 = vld [vmem:[#allocation3 + $0x1a0] sm:$0xff]
    %v454 = vld [vmem:[#allocation3 + $0x1a8] sm:$0xff]
    %v455 = vld [vmem:[#allocation3 + $0x1b0] sm:$0xff]
    %v456 = vld [vmem:[#allocation3 + $0x1b8] sm:$0xff]
    %v457 = vld [vmem:[#allocation3 + $0x1c0] sm:$0xff]
    %v458 = vld [vmem:[#allocation3 + $0x1c8] sm:$0xff]
    %v459 = vld [vmem:[#allocation3 + $0x1d0] sm:$0xff]
    %v460 = vld [vmem:[#allocation3 + $0x1d8] sm:$0xff]
    %v461 = vld [vmem:[#allocation3 + $0x1e0] sm:$0xff]
    %v462 = vld [vmem:[#allocation3 + $0x1e8] sm:$0xff]
    %v463 = vld [vmem:[#allocation3 + $0x1f0] sm:$0xff]
    %v464 = vld [vmem:[#allocation3 + $0x1f8] sm:$0xff]
    %v465 = vld [vmem:[#allocation2 + $0x20] sm:$0xff]
    %v466 = vld [vmem:[#allocation2 + $0x28] sm:$0xff]
    %v467 = vld [vmem:[#allocation2 + $0x30] sm:$0xff]
    %v468 = vld [vmem:[#allocation2 + $0x38] sm:$0xff]
    %469 = vmatprep.subr.mxu0 %v462
    %470 = vmatpush1.msra.mxu0 %v461
    %471 = vmatprep.subr.mxu0 %v458
    %472 = vmatpush1.msra.mxu0 %v457
    %473 = vmatprep.subr.mxu0 %v454
    %474 = vmatpush1.msra.mxu0 %v453
    %475 = vmatprep.subr.mxu0 %v450
    %476 = vmatpush1.msra.mxu0 %v449
    %477 = vmatprep.subr.mxu0 %v446
    %478 = vmatpush1.msra.mxu0 %v445
    %479 = vmatprep.subr.mxu0 %v442
    %480 = vmatpush1.msra.mxu0 %v441
    %481 = vmatprep.subr.mxu0 %v438
    %482 = vmatpush1.msra.mxu0 %v437
    %483 = vmatprep.subr.mxu0 %v434
    %484 = vmatpush1.msra.mxu0 %v433
    %485 = vmatprep.subr.mxu0 %v430
    %486 = vmatpush1.msra.mxu0 %v429
    %487 = vmatprep.subr.mxu0 %v426
    %488 = vmatpush1.msra.mxu0 %v425
    %489 = vmatprep.subr.mxu0 %v422
    %490 = vmatpush1.msra.mxu0 %v421
    %491 = vmatprep.subr.mxu0 %v418
    %492 = vmatpush1.msra.mxu0 %v417
    %493 = vmatprep.subr.mxu0 %v414
    %494 = vmatpush1.msra.mxu0 %v413
    %495 = vmatprep.subr.mxu0 %v410
    %496 = vmatpush1.msra.mxu0 %v409
    %497 = vmatprep.subr.mxu0 %v406
    %498 = vmatpush1.msra.mxu0 %v405
    %499 = vmatprep.subr.mxu0 %v402
    %500 = vmatpush1.msra.mxu0 %v401
    %501 = vmatprep.subr.mxu0 0.0
    %502 = vmatpush2.msra.mxu0 0.0
    %503 = vmatprep.subr.mxu0 0.0
    %504 = vmatpush2.msra.mxu0 0.0
    %505 = vmatprep.subr.mxu0 0.0
    %506 = vmatpush2.msra.mxu0 0.0
    %507 = vmatprep.subr.mxu0 0.0
    %508 = vmatpush2.msra.mxu0 0.0
    %509 = vmatprep.subr.mxu0 0.0
    %510 = vmatpush2.msra.mxu0 0.0
    %511 = vmatprep.subr.mxu0 0.0
    %512 = vmatpush2.msra.mxu0 0.0
    %513 = vmatprep.subr.mxu0 0.0
    %514 = vmatpush2.msra.mxu0 0.0
    %515 = vmatprep.subr.mxu0 0.0
    %516 = vmatpush2.msra.mxu0 0.0
    %517 = vmatprep.subr.mxu0 0.0
    %518 = vmatpush2.msra.mxu0 0.0
    %519 = vmatprep.subr.mxu0 0.0
    %520 = vmatpush2.msra.mxu0 0.0
    %521 = vmatprep.subr.mxu0 0.0
    %522 = vmatpush2.msra.mxu0 0.0
    %523 = vmatprep.subr.mxu0 0.0
    %524 = vmatpush2.msra.mxu0 0.0
    %525 = vmatprep.subr.mxu0 0.0
    %526 = vmatpush2.msra.mxu0 0.0
    %527 = vmatprep.subr.mxu0 0.0
    %528 = vmatpush2.msra.mxu0 0.0
    %529 = vmatprep.subr.mxu0 0.0
    %530 = vmatpush2.msra.mxu0 0.0
    %531 = vmatprep.subr.mxu0 0.0
    %532 = vmatpush2.msra.mxu0 0.0
    %533 = vmatprep.mubr.f32.mxu0 0.0
    %534 = vmatmul.mubr.f32.gmra.mxu0 %v399
    %v535 = vpop.f32.mrf.mxu0
    %v536 = vadd.f32 %v465, %v535
    %v537 = vpop.f32.mrf.mxu0
    %v538 = vadd.f32 %v466, %v537
    %539 = vdwg.mxu0
    %540 = vmatprep.subr.mxu0 %v464
    %541 = vmatpush1.msra.mxu0 %v463
    %542 = vmatprep.subr.mxu0 %v460
    %543 = vmatpush1.msra.mxu0 %v459
    %544 = vmatprep.subr.mxu0 %v456
    %545 = vmatpush1.msra.mxu0 %v455
    %546 = vmatprep.subr.mxu0 %v452
    %547 = vmatpush1.msra.mxu0 %v451
    %548 = vmatprep.subr.mxu0 %v448
    %549 = vmatpush1.msra.mxu0 %v447
    %550 = vmatprep.subr.mxu0 %v444
    %551 = vmatpush1.msra.mxu0 %v443
    %552 = vmatprep.subr.mxu0 %v440
    %553 = vmatpush1.msra.mxu0 %v439
    %554 = vmatprep.subr.mxu0 %v436
    %555 = vmatpush1.msra.mxu0 %v435
    %556 = vmatprep.subr.mxu0 %v432
    %557 = vmatpush1.msra.mxu0 %v431
    %558 = vmatprep.subr.mxu0 %v428
    %559 = vmatpush1.msra.mxu0 %v427
    %560 = vmatprep.subr.mxu0 %v424
    %561 = vmatpush1.msra.mxu0 %v423
    %562 = vmatprep.subr.mxu0 %v420
    %563 = vmatpush1.msra.mxu0 %v419
    %564 = vmatprep.subr.mxu0 %v416
    %565 = vmatpush1.msra.mxu0 %v415
    %566 = vmatprep.subr.mxu0 %v412
    %567 = vmatpush1.msra.mxu0 %v411
    %568 = vmatprep.subr.mxu0 %v408
    %569 = vmatpush1.msra.mxu0 %v407
    %570 = vmatprep.subr.mxu0 %v404
    %571 = vmatpush1.msra.mxu0 %v403
    %572 = vmatprep.subr.mxu0 0.0
    %573 = vmatpush2.msra.mxu0 0.0
    %574 = vmatprep.subr.mxu0 0.0
    %575 = vmatpush2.msra.mxu0 0.0
    %576 = vmatprep.subr.mxu0 0.0
    %577 = vmatpush2.msra.mxu0 0.0
    %578 = vmatprep.subr.mxu0 0.0
    %579 = vmatpush2.msra.mxu0 0.0
    %580 = vmatprep.subr.mxu0 0.0
    %581 = vmatpush2.msra.mxu0 0.0
    %582 = vmatprep.subr.mxu0 0.0
    %583 = vmatpush2.msra.mxu0 0.0
    %584 = vmatprep.subr.mxu0 0.0
    %585 = vmatpush2.msra.mxu0 0.0
    %586 = vmatprep.subr.mxu0 0.0
    %587 = vmatpush2.msra.mxu0 0.0
    %588 = vmatprep.subr.mxu0 0.0
    %589 = vmatpush2.msra.mxu0 0.0
    %590 = vmatprep.subr.mxu0 0.0
    %591 = vmatpush2.msra.mxu0 0.0
    %592 = vmatprep.subr.mxu0 0.0
    %593 = vmatpush2.msra.mxu0 0.0
    %594 = vmatprep.subr.mxu0 0.0
    %595 = vmatpush2.msra.mxu0 0.0
    %596 = vmatprep.subr.mxu0 0.0
    %597 = vmatpush2.msra.mxu0 0.0
    %598 = vmatprep.subr.mxu0 0.0
    %599 = vmatpush2.msra.mxu0 0.0
    %600 = vmatprep.subr.mxu0 0.0
    %601 = vmatpush2.msra.mxu0 0.0
    %602 = vmatprep.subr.mxu0 0.0
    %603 = vmatpush2.msra.mxu0 0.0
    %604 = vmatprep.mubr.f32.mxu0 0.0
    %605 = vmatmul.mubr.f32.gmra.mxu0 %v399
    %v606 = vpop.f32.mrf.mxu0
    %v607 = vadd.f32 %v467, %v606
    %v608 = vpop.f32.mrf.mxu0
    %v609 = vadd.f32 %v468, %v608
    %610 = vdwg.mxu0
    %v611 = vxor.u32 %v536, 2147483648
    %v612 = vxor.u32 %v538, 2147483648
    %v613 = vxor.u32 %v607, 2147483648
    %v614 = vmul.f32 %v611, 1.442695
    %v615 = vpow.pop %v614
    %v616 = vmul.f32 %v612, 1.442695
    %v617 = vpow.pop %v616
    %v618 = vmul.f32 %v613, 1.442695
    %v619 = vpow.pop %v618
    %v620 = vadd.f32 %v615, 1.0
    %v621 = vadd.f32 %v617, 1.0
    %v622 = vadd.f32 %v619, 1.0
    %v623 = vrcp.pop %v620
    %v624 = vmul.f32 1.0, %v623
    %v625 = vrcp.pop %v621
    %v626 = vmul.f32 1.0, %v625
    %v627 = vrcp.pop %v622
    %v628 = vmul.f32 1.0, %v627
    %v629 = vtanh.pop %v609
    %v630 = vmul.f32 %v626, %v400
    %v631 = vmul.f32 %v624, %v629
    %v632 = vadd.f32 %v630, %v631
    %v633 = vtanh.pop %v632
    %v634 = vmul.f32 %v628, %v633
    %v635 = vld [vmem:[#allocation2 + $0x40] sm:$0xff]
    %v636 = vld [vmem:[#allocation2 + $0x48] sm:$0xff]
    %v637 = vld [vmem:[#allocation2 + $0x50] sm:$0xff]
    %v638 = vld [vmem:[#allocation2 + $0x58] sm:$0xff]
    %639 = vmatprep.subr.mxu0 %v462
    %640 = vmatpush1.msra.mxu0 %v461
    %641 = vmatprep.subr.mxu0 %v458
    %642 = vmatpush1.msra.mxu0 %v457
    %643 = vmatprep.subr.mxu0 %v454
    %644 = vmatpush1.msra.mxu0 %v453
    %645 = vmatprep.subr.mxu0 %v450
    %646 = vmatpush1.msra.mxu0 %v449
    %647 = vmatprep.subr.mxu0 %v446
    %648 = vmatpush1.msra.mxu0 %v445
    %649 = vmatprep.subr.mxu0 %v442
    %650 = vmatpush1.msra.mxu0 %v441
    %651 = vmatprep.subr.mxu0 %v438
    %652 = vmatpush1.msra.mxu0 %v437
    %653 = vmatprep.subr.mxu0 %v434
    %654 = vmatpush1.msra.mxu0 %v433
    %655 = vmatprep.subr.mxu0 %v430
    %656 = vmatpush1.msra.mxu0 %v429
    %657 = vmatprep.subr.mxu0 %v426
    %658 = vmatpush1.msra.mxu0 %v425
    %659 = vmatprep.subr.mxu0 %v422
    %660 = vmatpush1.msra.mxu0 %v421
    %661 = vmatprep.subr.mxu0 %v418
    %662 = vmatpush1.msra.mxu0 %v417
    %663 = vmatprep.subr.mxu0 %v414
    %664 = vmatpush1.msra.mxu0 %v413
    %665 = vmatprep.subr.mxu0 %v410
    %666 = vmatpush1.msra.mxu0 %v409
    %667 = vmatprep.subr.mxu0 %v406
    %668 = vmatpush1.msra.mxu0 %v405
    %669 = vmatprep.subr.mxu0 %v402
    %670 = vmatpush1.msra.mxu0 %v401
    %671 = vmatprep.subr.mxu0 0.0
    %672 = vmatpush2.msra.mxu0 0.0
    %673 = vmatprep.subr.mxu0 0.0
    %674 = vmatpush2.msra.mxu0 0.0
    %675 = vmatprep.subr.mxu0 0.0
    %676 = vmatpush2.msra.mxu0 0.0
    %677 = vmatprep.subr.mxu0 0.0
    %678 = vmatpush2.msra.mxu0 0.0
    %679 = vmatprep.subr.mxu0 0.0
    %680 = vmatpush2.msra.mxu0 0.0
    %681 = vmatprep.subr.mxu0 0.0
    %682 = vmatpush2.msra.mxu0 0.0
    %683 = vmatprep.subr.mxu0 0.0
    %684 = vmatpush2.msra.mxu0 0.0
    %685 = vmatprep.subr.mxu0 0.0
    %686 = vmatpush2.msra.mxu0 0.0
    %687 = vmatprep.subr.mxu0 0.0
    %688 = vmatpush2.msra.mxu0 0.0
    %689 = vmatprep.subr.mxu0 0.0
    %690 = vmatpush2.msra.mxu0 0.0
    %691 = vmatprep.subr.mxu0 0.0
    %692 = vmatpush2.msra.mxu0 0.0
    %693 = vmatprep.subr.mxu0 0.0
    %694 = vmatpush2.msra.mxu0 0.0
    %695 = vmatprep.subr.mxu0 0.0
    %696 = vmatpush2.msra.mxu0 0.0
    %697 = vmatprep.subr.mxu0 0.0
    %698 = vmatpush2.msra.mxu0 0.0
    %699 = vmatprep.subr.mxu0 0.0
    %700 = vmatpush2.msra.mxu0 0.0
    %701 = vmatprep.subr.mxu0 0.0
    %702 = vmatpush2.msra.mxu0 0.0
    %703 = vmatprep.mubr.f32.mxu0 0.0
    %704 = vmatmul.mubr.f32.gmra.mxu0 %v634
    %v705 = vpop.f32.mrf.mxu0
    %v706 = vadd.f32 %v635, %v705
    %v707 = vpop.f32.mrf.mxu0
    %v708 = vadd.f32 %v636, %v707
    %709 = vdwg.mxu0
    %710 = vmatprep.subr.mxu0 %v464
    %711 = vmatpush1.msra.mxu0 %v463
    %712 = vmatprep.subr.mxu0 %v460
    %713 = vmatpush1.msra.mxu0 %v459
    %714 = vmatprep.subr.mxu0 %v456
    %715 = vmatpush1.msra.mxu0 %v455
    %716 = vmatprep.subr.mxu0 %v452
    %717 = vmatpush1.msra.mxu0 %v451
    %718 = vmatprep.subr.mxu0 %v448
    %719 = vmatpush1.msra.mxu0 %v447
    %720 = vmatprep.subr.mxu0 %v444
    %721 = vmatpush1.msra.mxu0 %v443
    %722 = vmatprep.subr.mxu0 %v440
    %723 = vmatpush1.msra.mxu0 %v439
    %724 = vmatprep.subr.mxu0 %v436
    %725 = vmatpush1.msra.mxu0 %v435
    %726 = vmatprep.subr.mxu0 %v432
    %727 = vmatpush1.msra.mxu0 %v431
    %728 = vmatprep.subr.mxu0 %v428
    %729 = vmatpush1.msra.mxu0 %v427
    %730 = vmatprep.subr.mxu0 %v424
    %731 = vmatpush1.msra.mxu0 %v423
    %732 = vmatprep.subr.mxu0 %v420
    %733 = vmatpush1.msra.mxu0 %v419
    %734 = vmatprep.subr.mxu0 %v416
    %735 = vmatpush1.msra.mxu0 %v415
    %736 = vmatprep.subr.mxu0 %v412
    %737 = vmatpush1.msra.mxu0 %v411
    %738 = vmatprep.subr.mxu0 %v408
    %739 = vmatpush1.msra.mxu0 %v407
    %740 = vmatprep.subr.mxu0 %v404
    %741 = vmatpush1.msra.mxu0 %v403
    %742 = vmatprep.subr.mxu0 0.0
    %743 = vmatpush2.msra.mxu0 0.0
    %744 = vmatprep.subr.mxu0 0.0
    %745 = vmatpush2.msra.mxu0 0.0
    %746 = vmatprep.subr.mxu0 0.0
    %747 = vmatpush2.msra.mxu0 0.0
    %748 = vmatprep.subr.mxu0 0.0
    %749 = vmatpush2.msra.mxu0 0.0
    %750 = vmatprep.subr.mxu0 0.0
    %751 = vmatpush2.msra.mxu0 0.0
    %752 = vmatprep.subr.mxu0 0.0
    %753 = vmatpush2.msra.mxu0 0.0
    %754 = vmatprep.subr.mxu0 0.0
    %755 = vmatpush2.msra.mxu0 0.0
    %756 = vmatprep.subr.mxu0 0.0
    %757 = vmatpush2.msra.mxu0 0.0
    %758 = vmatprep.subr.mxu0 0.0
    %759 = vmatpush2.msra.mxu0 0.0
    %760 = vmatprep.subr.mxu0 0.0
    %761 = vmatpush2.msra.mxu0 0.0
    %762 = vmatprep.subr.mxu0 0.0
    %763 = vmatpush2.msra.mxu0 0.0
    %764 = vmatprep.subr.mxu0 0.0
    %765 = vmatpush2.msra.mxu0 0.0
    %766 = vmatprep.subr.mxu0 0.0
    %767 = vmatpush2.msra.mxu0 0.0
    %768 = vmatprep.subr.mxu0 0.0
    %769 = vmatpush2.msra.mxu0 0.0
    %770 = vmatprep.subr.mxu0 0.0
    %771 = vmatpush2.msra.mxu0 0.0
    %772 = vmatprep.subr.mxu0 0.0
    %773 = vmatpush2.msra.mxu0 0.0
    %774 = vmatprep.mubr.f32.mxu0 0.0
    %775 = vmatmul.mubr.f32.gmra.mxu0 %v634
    %v776 = vpop.f32.mrf.mxu0
    %v777 = vadd.f32 %v637, %v776
    %v778 = vpop.f32.mrf.mxu0
    %v779 = vadd.f32 %v638, %v778
    %780 = vdwg.mxu0
    %v781 = vxor.u32 %v706, 2147483648
    %v782 = vxor.u32 %v708, 2147483648
    %v783 = vxor.u32 %v777, 2147483648
    %v784 = vmul.f32 %v781, 1.442695
    %v785 = vpow.pop %v784
    %v786 = vmul.f32 %v782, 1.442695
    %v787 = vpow.pop %v786
    %v788 = vmul.f32 %v783, 1.442695
    %v789 = vpow.pop %v788
    %v790 = vadd.f32 %v785, 1.0
    %v791 = vadd.f32 %v787, 1.0
    %v792 = vadd.f32 %v789, 1.0
    %v793 = vrcp.pop %v790
    %v794 = vmul.f32 1.0, %v793
    %v795 = vrcp.pop %v791
    %v796 = vmul.f32 1.0, %v795
    %v797 = vrcp.pop %v792
    %v798 = vmul.f32 1.0, %v797
    %v799 = vtanh.pop %v779
    %v800 = vmul.f32 %v796, %v632
    %v801 = vmul.f32 %v794, %v799
    %v802 = vadd.f32 %v800, %v801
    %v803 = vtanh.pop %v802
    %v804 = vmul.f32 %v798, %v803
    %v805 = vld [vmem:[#allocation2 + $0x60] sm:$0xff]
    %v806 = vld [vmem:[#allocation2 + $0x68] sm:$0xff]
    %v807 = vld [vmem:[#allocation2 + $0x70] sm:$0xff]
    %v808 = vld [vmem:[#allocation2 + $0x78] sm:$0xff]
    %809 = vmatprep.subr.mxu0 %v462
    %810 = vmatpush1.msra.mxu0 %v461
    %811 = vmatprep.subr.mxu0 %v458
    %812 = vmatpush1.msra.mxu0 %v457
    %813 = vmatprep.subr.mxu0 %v454
    %814 = vmatpush1.msra.mxu0 %v453
    %815 = vmatprep.subr.mxu0 %v450
    %816 = vmatpush1.msra.mxu0 %v449
    %817 = vmatprep.subr.mxu0 %v446
    %818 = vmatpush1.msra.mxu0 %v445
    %819 = vmatprep.subr.mxu0 %v442
    %820 = vmatpush1.msra.mxu0 %v441
    %821 = vmatprep.subr.mxu0 %v438
    %822 = vmatpush1.msra.mxu0 %v437
    %823 = vmatprep.subr.mxu0 %v434
    %824 = vmatpush1.msra.mxu0 %v433
    %825 = vmatprep.subr.mxu0 %v430
    %826 = vmatpush1.msra.mxu0 %v429
    %827 = vmatprep.subr.mxu0 %v426
    %828 = vmatpush1.msra.mxu0 %v425
    %829 = vmatprep.subr.mxu0 %v422
    %830 = vmatpush1.msra.mxu0 %v421
    %831 = vmatprep.subr.mxu0 %v418
    %832 = vmatpush1.msra.mxu0 %v417
    %833 = vmatprep.subr.mxu0 %v414
    %834 = vmatpush1.msra.mxu0 %v413
    %835 = vmatprep.subr.mxu0 %v410
    %836 = vmatpush1.msra.mxu0 %v409
    %837 = vmatprep.subr.mxu0 %v406
    %838 = vmatpush1.msra.mxu0 %v405
    %839 = vmatprep.subr.mxu0 %v402
    %840 = vmatpush1.msra.mxu0 %v401
    %841 = vmatprep.subr.mxu0 0.0
    %842 = vmatpush2.msra.mxu0 0.0
    %843 = vmatprep.subr.mxu0 0.0
    %844 = vmatpush2.msra.mxu0 0.0
    %845 = vmatprep.subr.mxu0 0.0
    %846 = vmatpush2.msra.mxu0 0.0
    %847 = vmatprep.subr.mxu0 0.0
    %848 = vmatpush2.msra.mxu0 0.0
    %849 = vmatprep.subr.mxu0 0.0
    %850 = vmatpush2.msra.mxu0 0.0
    %851 = vmatprep.subr.mxu0 0.0
    %852 = vmatpush2.msra.mxu0 0.0
    %853 = vmatprep.subr.mxu0 0.0
    %854 = vmatpush2.msra.mxu0 0.0
    %855 = vmatprep.subr.mxu0 0.0
    %856 = vmatpush2.msra.mxu0 0.0
    %857 = vmatprep.subr.mxu0 0.0
    %858 = vmatpush2.msra.mxu0 0.0
    %859 = vmatprep.subr.mxu0 0.0
    %860 = vmatpush2.msra.mxu0 0.0
    %861 = vmatprep.subr.mxu0 0.0
    %862 = vmatpush2.msra.mxu0 0.0
    %863 = vmatprep.subr.mxu0 0.0
    %864 = vmatpush2.msra.mxu0 0.0
    %865 = vmatprep.subr.mxu0 0.0
    %866 = vmatpush2.msra.mxu0 0.0
    %867 = vmatprep.subr.mxu0 0.0
    %868 = vmatpush2.msra.mxu0 0.0
    %869 = vmatprep.subr.mxu0 0.0
    %870 = vmatpush2.msra.mxu0 0.0
    %871 = vmatprep.subr.mxu0 0.0
    %872 = vmatpush2.msra.mxu0 0.0
    %873 = vmatprep.mubr.f32.mxu0 0.0
    %874 = vmatmul.mubr.f32.gmra.mxu0 %v804
    %v875 = vpop.f32.mrf.mxu0
    %v876 = vadd.f32 %v805, %v875
    %v877 = vpop.f32.mrf.mxu0
    %v878 = vadd.f32 %v806, %v877
    %879 = vdwg.mxu0
    %880 = vmatprep.subr.mxu0 %v464
    %881 = vmatpush1.msra.mxu0 %v463
    %882 = vmatprep.subr.mxu0 %v460
    %883 = vmatpush1.msra.mxu0 %v459
    %884 = vmatprep.subr.mxu0 %v456
    %885 = vmatpush1.msra.mxu0 %v455
    %886 = vmatprep.subr.mxu0 %v452
    %887 = vmatpush1.msra.mxu0 %v451
    %888 = vmatprep.subr.mxu0 %v448
    %889 = vmatpush1.msra.mxu0 %v447
    %890 = vmatprep.subr.mxu0 %v444
    %891 = vmatpush1.msra.mxu0 %v443
    %892 = vmatprep.subr.mxu0 %v440
    %893 = vmatpush1.msra.mxu0 %v439
    %894 = vmatprep.subr.mxu0 %v436
    %895 = vmatpush1.msra.mxu0 %v435
    %896 = vmatprep.subr.mxu0 %v432
    %897 = vmatpush1.msra.mxu0 %v431
    %898 = vmatprep.subr.mxu0 %v428
    %899 = vmatpush1.msra.mxu0 %v427
    %900 = vmatprep.subr.mxu0 %v424
    %901 = vmatpush1.msra.mxu0 %v423
    %902 = vmatprep.subr.mxu0 %v420
    %903 = vmatpush1.msra.mxu0 %v419
    %904 = vmatprep.subr.mxu0 %v416
    %905 = vmatpush1.msra.mxu0 %v415
    %906 = vmatprep.subr.mxu0 %v412
    %907 = vmatpush1.msra.mxu0 %v411
    %908 = vmatprep.subr.mxu0 %v408
    %909 = vmatpush1.msra.mxu0 %v407
    %910 = vmatprep.subr.mxu0 %v404
    %911 = vmatpush1.msra.mxu0 %v403
    %912 = vmatprep.subr.mxu0 0.0
    %913 = vmatpush2.msra.mxu0 0.0
    %914 = vmatprep.subr.mxu0 0.0
    %915 = vmatpush2.msra.mxu0 0.0
    %916 = vmatprep.subr.mxu0 0.0
    %917 = vmatpush2.msra.mxu0 0.0
    %918 = vmatprep.subr.mxu0 0.0
    %919 = vmatpush2.msra.mxu0 0.0
    %920 = vmatprep.subr.mxu0 0.0
    %921 = vmatpush2.msra.mxu0 0.0
    %922 = vmatprep.subr.mxu0 0.0
    %923 = vmatpush2.msra.mxu0 0.0
    %924 = vmatprep.subr.mxu0 0.0
    %925 = vmatpush2.msra.mxu0 0.0
    %926 = vmatprep.subr.mxu0 0.0
    %927 = vmatpush2.msra.mxu0 0.0
    %928 = vmatprep.subr.mxu0 0.0
    %929 = vmatpush2.msra.mxu0 0.0
    %930 = vmatprep.subr.mxu0 0.0
    %931 = vmatpush2.msra.mxu0 0.0
    %932 = vmatprep.subr.mxu0 0.0
    %933 = vmatpush2.msra.mxu0 0.0
    %934 = vmatprep.subr.mxu0 0.0
    %935 = vmatpush2.msra.mxu0 0.0
    %936 = vmatprep.subr.mxu0 0.0
    %937 = vmatpush2.msra.mxu0 0.0
    %938 = vmatprep.subr.mxu0 0.0
    %939 = vmatpush2.msra.mxu0 0.0
    %940 = vmatprep.subr.mxu0 0.0
    %941 = vmatpush2.msra.mxu0 0.0
    %942 = vmatprep.subr.mxu0 0.0
    %943 = vmatpush2.msra.mxu0 0.0
    %944 = vmatprep.mubr.f32.mxu0 0.0
    %945 = vmatmul.mubr.f32.gmra.mxu0 %v804
    %v946 = vpop.f32.mrf.mxu0
    %v947 = vadd.f32 %v807, %v946
    %v948 = vpop.f32.mrf.mxu0
    %v949 = vadd.f32 %v808, %v948
    %950 = vdwg.mxu0
    %v951 = vxor.u32 %v876, 2147483648
    %v952 = vxor.u32 %v878, 2147483648
    %v953 = vxor.u32 %v947, 2147483648
    %v954 = vmul.f32 %v951, 1.442695
    %v955 = vpow.pop %v954
    %v956 = vmul.f32 %v952, 1.442695
    %v957 = vpow.pop %v956
    %v958 = vmul.f32 %v953, 1.442695
    %v959 = vpow.pop %v958
    %v960 = vadd.f32 %v955, 1.0
    %v961 = vadd.f32 %v957, 1.0
    %v962 = vadd.f32 %v959, 1.0
    %v963 = vrcp.pop %v960
    %v964 = vmul.f32 1.0, %v963
    %v965 = vrcp.pop %v961
    %v966 = vmul.f32 1.0, %v965
    %v967 = vrcp.pop %v962
    %v968 = vmul.f32 1.0, %v967
    %v969 = vtanh.pop %v949
    %v970 = vmul.f32 %v966, %v802
    %v971 = vmul.f32 %v964, %v969
    %v972 = vadd.f32 %v970, %v971
    %v973 = vtanh.pop %v972
    %v974 = vmul.f32 %v968, %v973
    %v975 = vld [vmem:[#allocation2 + $0x80] sm:$0xff]
    %v976 = vld [vmem:[#allocation2 + $0x88] sm:$0xff]
    %v977 = vld [vmem:[#allocation2 + $0x90] sm:$0xff]
    %v978 = vld [vmem:[#allocation2 + $0x98] sm:$0xff]
    %979 = vmatprep.subr.mxu0 %v462
    %980 = vmatpush1.msra.mxu0 %v461
    %981 = vmatprep.subr.mxu0 %v458
    %982 = vmatpush1.msra.mxu0 %v457
    %983 = vmatprep.subr.mxu0 %v454
    %984 = vmatpush1.msra.mxu0 %v453
    %985 = vmatprep.subr.mxu0 %v450
    %986 = vmatpush1.msra.mxu0 %v449
    %987 = vmatprep.subr.mxu0 %v446
    %988 = vmatpush1.msra.mxu0 %v445
    %989 = vmatprep.subr.mxu0 %v442
    %990 = vmatpush1.msra.mxu0 %v441
    %991 = vmatprep.subr.mxu0 %v438
    %992 = vmatpush1.msra.mxu0 %v437
    %993 = vmatprep.subr.mxu0 %v434
    %994 = vmatpush1.msra.mxu0 %v433
    %995 = vmatprep.subr.mxu0 %v430
    %996 = vmatpush1.msra.mxu0 %v429
    %997 = vmatprep.subr.mxu0 %v426
    %998 = vmatpush1.msra.mxu0 %v425
    %999 = vmatprep.subr.mxu0 %v422
    %1000 = vmatpush1.msra.mxu0 %v421
    %1001 = vmatprep.subr.mxu0 %v418
    %1002 = vmatpush1.msra.mxu0 %v417
    %1003 = vmatprep.subr.mxu0 %v414
    %1004 = vmatpush1.msra.mxu0 %v413
    %1005 = vmatprep.subr.mxu0 %v410
    %1006 = vmatpush1.msra.mxu0 %v409
    %1007 = vmatprep.subr.mxu0 %v406
    %1008 = vmatpush1.msra.mxu0 %v405
    %1009 = vmatprep.subr.mxu0 %v402
    %1010 = vmatpush1.msra.mxu0 %v401
    %1011 = vmatprep.subr.mxu0 0.0
    %1012 = vmatpush2.msra.mxu0 0.0
    %1013 = vmatprep.subr.mxu0 0.0
    %1014 = vmatpush2.msra.mxu0 0.0
    %1015 = vmatprep.subr.mxu0 0.0
    %1016 = vmatpush2.msra.mxu0 0.0
    %1017 = vmatprep.subr.mxu0 0.0
    %1018 = vmatpush2.msra.mxu0 0.0
    %1019 = vmatprep.subr.mxu0 0.0
    %1020 = vmatpush2.msra.mxu0 0.0
    %1021 = vmatprep.subr.mxu0 0.0
    %1022 = vmatpush2.msra.mxu0 0.0
    %1023 = vmatprep.subr.mxu0 0.0
    %1024 = vmatpush2.msra.mxu0 0.0
    %1025 = vmatprep.subr.mxu0 0.0
    %1026 = vmatpush2.msra.mxu0 0.0
    %1027 = vmatprep.subr.mxu0 0.0
    %1028 = vmatpush2.msra.mxu0 0.0
    %1029 = vmatprep.subr.mxu0 0.0
    %1030 = vmatpush2.msra.mxu0 0.0
    %1031 = vmatprep.subr.mxu0 0.0
    %1032 = vmatpush2.msra.mxu0 0.0
    %1033 = vmatprep.subr.mxu0 0.0
    %1034 = vmatpush2.msra.mxu0 0.0
    %1035 = vmatprep.subr.mxu0 0.0
    %1036 = vmatpush2.msra.mxu0 0.0
    %1037 = vmatprep.subr.mxu0 0.0
    %1038 = vmatpush2.msra.mxu0 0.0
    %1039 = vmatprep.subr.mxu0 0.0
    %1040 = vmatpush2.msra.mxu0 0.0
    %1041 = vmatprep.subr.mxu0 0.0
    %1042 = vmatpush2.msra.mxu0 0.0
    %1043 = vmatprep.mubr.f32.mxu0 0.0
    %1044 = vmatmul.mubr.f32.gmra.mxu0 %v974
    %v1045 = vpop.f32.mrf.mxu0
    %v1046 = vadd.f32 %v975, %v1045
    %v1047 = vpop.f32.mrf.mxu0
    %v1048 = vadd.f32 %v976, %v1047
    %1049 = vdwg.mxu0
    %1050 = vmatprep.subr.mxu0 %v464
    %1051 = vmatpush1.msra.mxu0 %v463
    %1052 = vmatprep.subr.mxu0 %v460
    %1053 = vmatpush1.msra.mxu0 %v459
    %1054 = vmatprep.subr.mxu0 %v456
    %1055 = vmatpush1.msra.mxu0 %v455
    %1056 = vmatprep.subr.mxu0 %v452
    %1057 = vmatpush1.msra.mxu0 %v451
    %1058 = vmatprep.subr.mxu0 %v448
    %1059 = vmatpush1.msra.mxu0 %v447
    %1060 = vmatprep.subr.mxu0 %v444
    %1061 = vmatpush1.msra.mxu0 %v443
    %1062 = vmatprep.subr.mxu0 %v440
    %1063 = vmatpush1.msra.mxu0 %v439
    %1064 = vmatprep.subr.mxu0 %v436
    %1065 = vmatpush1.msra.mxu0 %v435
    %1066 = vmatprep.subr.mxu0 %v432
    %1067 = vmatpush1.msra.mxu0 %v431
    %1068 = vmatprep.subr.mxu0 %v428
    %1069 = vmatpush1.msra.mxu0 %v427
    %1070 = vmatprep.subr.mxu0 %v424
    %1071 = vmatpush1.msra.mxu0 %v423
    %1072 = vmatprep.subr.mxu0 %v420
    %1073 = vmatpush1.msra.mxu0 %v419
    %1074 = vmatprep.subr.mxu0 %v416
    %1075 = vmatpush1.msra.mxu0 %v415
    %1076 = vmatprep.subr.mxu0 %v412
    %1077 = vmatpush1.msra.mxu0 %v411
    %1078 = vmatprep.subr.mxu0 %v408
    %1079 = vmatpush1.msra.mxu0 %v407
    %1080 = vmatprep.subr.mxu0 %v404
    %1081 = vmatpush1.msra.mxu0 %v403
    %1082 = vmatprep.subr.mxu0 0.0
    %1083 = vmatpush2.msra.mxu0 0.0
    %1084 = vmatprep.subr.mxu0 0.0
    %1085 = vmatpush2.msra.mxu0 0.0
    %1086 = vmatprep.subr.mxu0 0.0
    %1087 = vmatpush2.msra.mxu0 0.0
    %1088 = vmatprep.subr.mxu0 0.0
    %1089 = vmatpush2.msra.mxu0 0.0
    %1090 = vmatprep.subr.mxu0 0.0
    %1091 = vmatpush2.msra.mxu0 0.0
    %1092 = vmatprep.subr.mxu0 0.0
    %1093 = vmatpush2.msra.mxu0 0.0
    %1094 = vmatprep.subr.mxu0 0.0
    %1095 = vmatpush2.msra.mxu0 0.0
    %1096 = vmatprep.subr.mxu0 0.0
    %1097 = vmatpush2.msra.mxu0 0.0
    %1098 = vmatprep.subr.mxu0 0.0
    %1099 = vmatpush2.msra.mxu0 0.0
    %1100 = vmatprep.subr.mxu0 0.0
    %1101 = vmatpush2.msra.mxu0 0.0
    %1102 = vmatprep.subr.mxu0 0.0
    %1103 = vmatpush2.msra.mxu0 0.0
    %1104 = vmatprep.subr.mxu0 0.0
    %1105 = vmatpush2.msra.mxu0 0.0
    %1106 = vmatprep.subr.mxu0 0.0
    %1107 = vmatpush2.msra.mxu0 0.0
    %1108 = vmatprep.subr.mxu0 0.0
    %1109 = vmatpush2.msra.mxu0 0.0
    %1110 = vmatprep.subr.mxu0 0.0
    %1111 = vmatpush2.msra.mxu0 0.0
    %1112 = vmatprep.subr.mxu0 0.0
    %1113 = vmatpush2.msra.mxu0 0.0
    %1114 = vmatprep.mubr.f32.mxu0 0.0
    %1115 = vmatmul.mubr.f32.gmra.mxu0 %v974
    %v1116 = vpop.f32.mrf.mxu0
    %v1117 = vadd.f32 %v977, %v1116
    %v1118 = vpop.f32.mrf.mxu0
    %v1119 = vadd.f32 %v978, %v1118
    %1120 = vdwg.mxu0
    %v1121 = vxor.u32 %v1046, 2147483648
    %v1122 = vxor.u32 %v1048, 2147483648
    %v1123 = vxor.u32 %v1117, 2147483648
    %v1124 = vmul.f32 %v1121, 1.442695
    %v1125 = vpow.pop %v1124
    %v1126 = vmul.f32 %v1122, 1.442695
    %v1127 = vpow.pop %v1126
    %v1128 = vmul.f32 %v1123, 1.442695
    %v1129 = vpow.pop %v1128
    %v1130 = vadd.f32 %v1125, 1.0
    %v1131 = vadd.f32 %v1127, 1.0
    %v1132 = vadd.f32 %v1129, 1.0
    %v1133 = vrcp.pop %v1130
    %v1134 = vmul.f32 1.0, %v1133
    %v1135 = vrcp.pop %v1131
    %v1136 = vmul.f32 1.0, %v1135
    %v1137 = vrcp.pop %v1132
    %v1138 = vmul.f32 1.0, %v1137
    %v1139 = vtanh.pop %v1119
    %v1140 = vmul.f32 %v1136, %v972
    %v1141 = vmul.f32 %v1134, %v1139
    %v1142 = vadd.f32 %v1140, %v1141
    %v1143 = vtanh.pop %v1142
    %v1144 = vmul.f32 %v1138, %v1143
    %v1145 = vld [vmem:[#allocation2 + $0xa0] sm:$0xff]
    %v1146 = vld [vmem:[#allocation2 + $0xa8] sm:$0xff]
    %v1147 = vld [vmem:[#allocation2 + $0xb0] sm:$0xff]
    %v1148 = vld [vmem:[#allocation2 + $0xb8] sm:$0xff]
    %1149 = vmatprep.subr.mxu0 %v462
    %1150 = vmatpush1.msra.mxu0 %v461
    %1151 = vmatprep.subr.mxu0 %v458
    %1152 = vmatpush1.msra.mxu0 %v457
    %1153 = vmatprep.subr.mxu0 %v454
    %1154 = vmatpush1.msra.mxu0 %v453
    %1155 = vmatprep.subr.mxu0 %v450
    %1156 = vmatpush1.msra.mxu0 %v449
    %1157 = vmatprep.subr.mxu0 %v446
    %1158 = vmatpush1.msra.mxu0 %v445
    %1159 = vmatprep.subr.mxu0 %v442
    %1160 = vmatpush1.msra.mxu0 %v441
    %1161 = vmatprep.subr.mxu0 %v438
    %1162 = vmatpush1.msra.mxu0 %v437
    %1163 = vmatprep.subr.mxu0 %v434
    %1164 = vmatpush1.msra.mxu0 %v433
    %1165 = vmatprep.subr.mxu0 %v430
    %1166 = vmatpush1.msra.mxu0 %v429
    %1167 = vmatprep.subr.mxu0 %v426
    %1168 = vmatpush1.msra.mxu0 %v425
    %1169 = vmatprep.subr.mxu0 %v422
    %1170 = vmatpush1.msra.mxu0 %v421
    %1171 = vmatprep.subr.mxu0 %v418
    %1172 = vmatpush1.msra.mxu0 %v417
    %1173 = vmatprep.subr.mxu0 %v414
    %1174 = vmatpush1.msra.mxu0 %v413
    %1175 = vmatprep.subr.mxu0 %v410
    %1176 = vmatpush1.msra.mxu0 %v409
    %1177 = vmatprep.subr.mxu0 %v406
    %1178 = vmatpush1.msra.mxu0 %v405
    %1179 = vmatprep.subr.mxu0 %v402
    %1180 = vmatpush1.msra.mxu0 %v401
    %1181 = vmatprep.subr.mxu0 0.0
    %1182 = vmatpush2.msra.mxu0 0.0
    %1183 = vmatprep.subr.mxu0 0.0
    %1184 = vmatpush2.msra.mxu0 0.0
    %1185 = vmatprep.subr.mxu0 0.0
    %1186 = vmatpush2.msra.mxu0 0.0
    %1187 = vmatprep.subr.mxu0 0.0
    %1188 = vmatpush2.msra.mxu0 0.0
    %1189 = vmatprep.subr.mxu0 0.0
    %1190 = vmatpush2.msra.mxu0 0.0
    %1191 = vmatprep.subr.mxu0 0.0
    %1192 = vmatpush2.msra.mxu0 0.0
    %1193 = vmatprep.subr.mxu0 0.0
    %1194 = vmatpush2.msra.mxu0 0.0
    %1195 = vmatprep.subr.mxu0 0.0
    %1196 = vmatpush2.msra.mxu0 0.0
    %1197 = vmatprep.subr.mxu0 0.0
    %1198 = vmatpush2.msra.mxu0 0.0
    %1199 = vmatprep.subr.mxu0 0.0
    %1200 = vmatpush2.msra.mxu0 0.0
    %1201 = vmatprep.subr.mxu0 0.0
    %1202 = vmatpush2.msra.mxu0 0.0
    %1203 = vmatprep.subr.mxu0 0.0
    %1204 = vmatpush2.msra.mxu0 0.0
    %1205 = vmatprep.subr.mxu0 0.0
    %1206 = vmatpush2.msra.mxu0 0.0
    %1207 = vmatprep.subr.mxu0 0.0
    %1208 = vmatpush2.msra.mxu0 0.0
    %1209 = vmatprep.subr.mxu0 0.0
    %1210 = vmatpush2.msra.mxu0 0.0
    %1211 = vmatprep.subr.mxu0 0.0
    %1212 = vmatpush2.msra.mxu0 0.0
    %1213 = vmatprep.mubr.f32.mxu0 0.0
    %1214 = vmatmul.mubr.f32.gmra.mxu0 %v1144
    %v1215 = vpop.f32.mrf.mxu0
    %v1216 = vadd.f32 %v1145, %v1215
    %v1217 = vpop.f32.mrf.mxu0
    %v1218 = vadd.f32 %v1146, %v1217
    %1219 = vdwg.mxu0
    %1220 = vmatprep.subr.mxu0 %v464
    %1221 = vmatpush1.msra.mxu0 %v463
    %1222 = vmatprep.subr.mxu0 %v460
    %1223 = vmatpush1.msra.mxu0 %v459
    %1224 = vmatprep.subr.mxu0 %v456
    %1225 = vmatpush1.msra.mxu0 %v455
    %1226 = vmatprep.subr.mxu0 %v452
    %1227 = vmatpush1.msra.mxu0 %v451
    %1228 = vmatprep.subr.mxu0 %v448
    %1229 = vmatpush1.msra.mxu0 %v447
    %1230 = vmatprep.subr.mxu0 %v444
    %1231 = vmatpush1.msra.mxu0 %v443
    %1232 = vmatprep.subr.mxu0 %v440
    %1233 = vmatpush1.msra.mxu0 %v439
    %1234 = vmatprep.subr.mxu0 %v436
    %1235 = vmatpush1.msra.mxu0 %v435
    %1236 = vmatprep.subr.mxu0 %v432
    %1237 = vmatpush1.msra.mxu0 %v431
    %1238 = vmatprep.subr.mxu0 %v428
    %1239 = vmatpush1.msra.mxu0 %v427
    %1240 = vmatprep.subr.mxu0 %v424
    %1241 = vmatpush1.msra.mxu0 %v423
    %1242 = vmatprep.subr.mxu0 %v420
    %1243 = vmatpush1.msra.mxu0 %v419
    %1244 = vmatprep.subr.mxu0 %v416
    %1245 = vmatpush1.msra.mxu0 %v415
    %1246 = vmatprep.subr.mxu0 %v412
    %1247 = vmatpush1.msra.mxu0 %v411
    %1248 = vmatprep.subr.mxu0 %v408
    %1249 = vmatpush1.msra.mxu0 %v407
    %1250 = vmatprep.subr.mxu0 %v404
    %1251 = vmatpush1.msra.mxu0 %v403
    %1252 = vmatprep.subr.mxu0 0.0
    %1253 = vmatpush2.msra.mxu0 0.0
    %1254 = vmatprep.subr.mxu0 0.0
    %1255 = vmatpush2.msra.mxu0 0.0
    %1256 = vmatprep.subr.mxu0 0.0
    %1257 = vmatpush2.msra.mxu0 0.0
    %1258 = vmatprep.subr.mxu0 0.0
    %1259 = vmatpush2.msra.mxu0 0.0
    %1260 = vmatprep.subr.mxu0 0.0
    %1261 = vmatpush2.msra.mxu0 0.0
    %1262 = vmatprep.subr.mxu0 0.0
    %1263 = vmatpush2.msra.mxu0 0.0
    %1264 = vmatprep.subr.mxu0 0.0
    %1265 = vmatpush2.msra.mxu0 0.0
    %1266 = vmatprep.subr.mxu0 0.0
    %1267 = vmatpush2.msra.mxu0 0.0
    %1268 = vmatprep.subr.mxu0 0.0
    %1269 = vmatpush2.msra.mxu0 0.0
    %1270 = vmatprep.subr.mxu0 0.0
    %1271 = vmatpush2.msra.mxu0 0.0
    %1272 = vmatprep.subr.mxu0 0.0
    %1273 = vmatpush2.msra.mxu0 0.0
    %1274 = vmatprep.subr.mxu0 0.0
    %1275 = vmatpush2.msra.mxu0 0.0
    %1276 = vmatprep.subr.mxu0 0.0
    %1277 = vmatpush2.msra.mxu0 0.0
    %1278 = vmatprep.subr.mxu0 0.0
    %1279 = vmatpush2.msra.mxu0 0.0
    %1280 = vmatprep.subr.mxu0 0.0
    %1281 = vmatpush2.msra.mxu0 0.0
    %1282 = vmatprep.subr.mxu0 0.0
    %1283 = vmatpush2.msra.mxu0 0.0
    %1284 = vmatprep.mubr.f32.mxu0 0.0
    %1285 = vmatmul.mubr.f32.gmra.mxu0 %v1144
    %v1286 = vpop.f32.mrf.mxu0
    %v1287 = vadd.f32 %v1147, %v1286
    %v1288 = vpop.f32.mrf.mxu0
    %v1289 = vadd.f32 %v1148, %v1288
    %1290 = vdwg.mxu0
    %v1291 = vxor.u32 %v1216, 2147483648
    %v1292 = vxor.u32 %v1218, 2147483648
    %v1293 = vxor.u32 %v1287, 2147483648
    %v1294 = vmul.f32 %v1291, 1.442695
    %v1295 = vpow.pop %v1294
    %v1296 = vmul.f32 %v1292, 1.442695
    %v1297 = vpow.pop %v1296
    %v1298 = vmul.f32 %v1293, 1.442695
    %v1299 = vpow.pop %v1298
    %v1300 = vadd.f32 %v1295, 1.0
    %v1301 = vadd.f32 %v1297, 1.0
    %v1302 = vadd.f32 %v1299, 1.0
    %v1303 = vrcp.pop %v1300
    %v1304 = vmul.f32 1.0, %v1303
    %v1305 = vrcp.pop %v1301
    %v1306 = vmul.f32 1.0, %v1305
    %v1307 = vrcp.pop %v1302
    %v1308 = vmul.f32 1.0, %v1307
    %v1309 = vtanh.pop %v1289
    %v1310 = vmul.f32 %v1306, %v1142
    %v1311 = vmul.f32 %v1304, %v1309
    %v1312 = vadd.f32 %v1310, %v1311
    %v1313 = vtanh.pop %v1312
    %v1314 = vmul.f32 %v1308, %v1313
    %v1315 = vld [vmem:[#allocation2 + $0xc0] sm:$0xff]
    %v1316 = vld [vmem:[#allocation2 + $0xc8] sm:$0xff]
    %v1317 = vld [vmem:[#allocation2 + $0xd0] sm:$0xff]
    %v1318 = vld [vmem:[#allocation2 + $0xd8] sm:$0xff]
    %1319 = vmatprep.subr.mxu0 %v462
    %1320 = vmatpush1.msra.mxu0 %v461
    %1321 = vmatprep.subr.mxu0 %v458
    %1322 = vmatpush1.msra.mxu0 %v457
    %1323 = vmatprep.subr.mxu0 %v454
    %1324 = vmatpush1.msra.mxu0 %v453
    %1325 = vmatprep.subr.mxu0 %v450
    %1326 = vmatpush1.msra.mxu0 %v449
    %1327 = vmatprep.subr.mxu0 %v446
    %1328 = vmatpush1.msra.mxu0 %v445
    %1329 = vmatprep.subr.mxu0 %v442
    %1330 = vmatpush1.msra.mxu0 %v441
    %1331 = vmatprep.subr.mxu0 %v438
    %1332 = vmatpush1.msra.mxu0 %v437
    %1333 = vmatprep.subr.mxu0 %v434
    %1334 = vmatpush1.msra.mxu0 %v433
    %1335 = vmatprep.subr.mxu0 %v430
    %1336 = vmatpush1.msra.mxu0 %v429
    %1337 = vmatprep.subr.mxu0 %v426
    %1338 = vmatpush1.msra.mxu0 %v425
    %1339 = vmatprep.subr.mxu0 %v422
    %1340 = vmatpush1.msra.mxu0 %v421
    %1341 = vmatprep.subr.mxu0 %v418
    %1342 = vmatpush1.msra.mxu0 %v417
    %1343 = vmatprep.subr.mxu0 %v414
    %1344 = vmatpush1.msra.mxu0 %v413
    %1345 = vmatprep.subr.mxu0 %v410
    %1346 = vmatpush1.msra.mxu0 %v409
    %1347 = vmatprep.subr.mxu0 %v406
    %1348 = vmatpush1.msra.mxu0 %v405
    %1349 = vmatprep.subr.mxu0 %v402
    %1350 = vmatpush1.msra.mxu0 %v401
    %1351 = vmatprep.subr.mxu0 0.0
    %1352 = vmatpush2.msra.mxu0 0.0
    %1353 = vmatprep.subr.mxu0 0.0
    %1354 = vmatpush2.msra.mxu0 0.0
    %1355 = vmatprep.subr.mxu0 0.0
    %1356 = vmatpush2.msra.mxu0 0.0
    %1357 = vmatprep.subr.mxu0 0.0
    %1358 = vmatpush2.msra.mxu0 0.0
    %1359 = vmatprep.subr.mxu0 0.0
    %1360 = vmatpush2.msra.mxu0 0.0
    %1361 = vmatprep.subr.mxu0 0.0
    %1362 = vmatpush2.msra.mxu0 0.0
    %1363 = vmatprep.subr.mxu0 0.0
    %1364 = vmatpush2.msra.mxu0 0.0
    %1365 = vmatprep.subr.mxu0 0.0
    %1366 = vmatpush2.msra.mxu0 0.0
    %1367 = vmatprep.subr.mxu0 0.0
    %1368 = vmatpush2.msra.mxu0 0.0
    %1369 = vmatprep.subr.mxu0 0.0
    %1370 = vmatpush2.msra.mxu0 0.0
    %1371 = vmatprep.subr.mxu0 0.0
    %1372 = vmatpush2.msra.mxu0 0.0
    %1373 = vmatprep.subr.mxu0 0.0
    %1374 = vmatpush2.msra.mxu0 0.0
    %1375 = vmatprep.subr.mxu0 0.0
    %1376 = vmatpush2.msra.mxu0 0.0
    %1377 = vmatprep.subr.mxu0 0.0
    %1378 = vmatpush2.msra.mxu0 0.0
    %1379 = vmatprep.subr.mxu0 0.0
    %1380 = vmatpush2.msra.mxu0 0.0
    %1381 = vmatprep.subr.mxu0 0.0
    %1382 = vmatpush2.msra.mxu0 0.0
    %1383 = vmatprep.mubr.f32.mxu0 0.0
    %1384 = vmatmul.mubr.f32.gmra.mxu0 %v1314
    %v1385 = vpop.f32.mrf.mxu0
    %v1386 = vadd.f32 %v1315, %v1385
    %v1387 = vpop.f32.mrf.mxu0
    %v1388 = vadd.f32 %v1316, %v1387
    %1389 = vdwg.mxu0
    %1390 = vmatprep.subr.mxu0 %v464
    %1391 = vmatpush1.msra.mxu0 %v463
    %1392 = vmatprep.subr.mxu0 %v460
    %1393 = vmatpush1.msra.mxu0 %v459
    %1394 = vmatprep.subr.mxu0 %v456
    %1395 = vmatpush1.msra.mxu0 %v455
    %1396 = vmatprep.subr.mxu0 %v452
    %1397 = vmatpush1.msra.mxu0 %v451
    %1398 = vmatprep.subr.mxu0 %v448
    %1399 = vmatpush1.msra.mxu0 %v447
    %1400 = vmatprep.subr.mxu0 %v444
    %1401 = vmatpush1.msra.mxu0 %v443
    %1402 = vmatprep.subr.mxu0 %v440
    %1403 = vmatpush1.msra.mxu0 %v439
    %1404 = vmatprep.subr.mxu0 %v436
    %1405 = vmatpush1.msra.mxu0 %v435
    %1406 = vmatprep.subr.mxu0 %v432
    %1407 = vmatpush1.msra.mxu0 %v431
    %1408 = vmatprep.subr.mxu0 %v428
    %1409 = vmatpush1.msra.mxu0 %v427
    %1410 = vmatprep.subr.mxu0 %v424
    %1411 = vmatpush1.msra.mxu0 %v423
    %1412 = vmatprep.subr.mxu0 %v420
    %1413 = vmatpush1.msra.mxu0 %v419
    %1414 = vmatprep.subr.mxu0 %v416
    %1415 = vmatpush1.msra.mxu0 %v415
    %1416 = vmatprep.subr.mxu0 %v412
    %1417 = vmatpush1.msra.mxu0 %v411
    %1418 = vmatprep.subr.mxu0 %v408
    %1419 = vmatpush1.msra.mxu0 %v407
    %1420 = vmatprep.subr.mxu0 %v404
    %1421 = vmatpush1.msra.mxu0 %v403
    %1422 = vmatprep.subr.mxu0 0.0
    %1423 = vmatpush2.msra.mxu0 0.0
    %1424 = vmatprep.subr.mxu0 0.0
    %1425 = vmatpush2.msra.mxu0 0.0
    %1426 = vmatprep.subr.mxu0 0.0
    %1427 = vmatpush2.msra.mxu0 0.0
    %1428 = vmatprep.subr.mxu0 0.0
    %1429 = vmatpush2.msra.mxu0 0.0
    %1430 = vmatprep.subr.mxu0 0.0
    %1431 = vmatpush2.msra.mxu0 0.0
    %1432 = vmatprep.subr.mxu0 0.0
    %1433 = vmatpush2.msra.mxu0 0.0
    %1434 = vmatprep.subr.mxu0 0.0
    %1435 = vmatpush2.msra.mxu0 0.0
    %1436 = vmatprep.subr.mxu0 0.0
    %1437 = vmatpush2.msra.mxu0 0.0
    %1438 = vmatprep.subr.mxu0 0.0
    %1439 = vmatpush2.msra.mxu0 0.0
    %1440 = vmatprep.subr.mxu0 0.0
    %1441 = vmatpush2.msra.mxu0 0.0
    %1442 = vmatprep.subr.mxu0 0.0
    %1443 = vmatpush2.msra.mxu0 0.0
    %1444 = vmatprep.subr.mxu0 0.0
    %1445 = vmatpush2.msra.mxu0 0.0
    %1446 = vmatprep.subr.mxu0 0.0
    %1447 = vmatpush2.msra.mxu0 0.0
    %1448 = vmatprep.subr.mxu0 0.0
    %1449 = vmatpush2.msra.mxu0 0.0
    %1450 = vmatprep.subr.mxu0 0.0
    %1451 = vmatpush2.msra.mxu0 0.0
    %1452 = vmatprep.subr.mxu0 0.0
    %1453 = vmatpush2.msra.mxu0 0.0
    %1454 = vmatprep.mubr.f32.mxu0 0.0
    %1455 = vmatmul.mubr.f32.gmra.mxu0 %v1314
    %v1456 = vpop.f32.mrf.mxu0
    %v1457 = vadd.f32 %v1317, %v1456
    %v1458 = vpop.f32.mrf.mxu0
    %v1459 = vadd.f32 %v1318, %v1458
    %1460 = vdwg.mxu0
    %v1461 = vxor.u32 %v1386, 2147483648
    %v1462 = vxor.u32 %v1388, 2147483648
    %v1463 = vxor.u32 %v1457, 2147483648
    %v1464 = vmul.f32 %v1461, 1.442695
    %v1465 = vpow.pop %v1464
    %v1466 = vmul.f32 %v1462, 1.442695
    %v1467 = vpow.pop %v1466
    %v1468 = vmul.f32 %v1463, 1.442695
    %v1469 = vpow.pop %v1468
    %v1470 = vadd.f32 %v1465, 1.0
    %v1471 = vadd.f32 %v1467, 1.0
    %v1472 = vadd.f32 %v1469, 1.0
    %v1473 = vrcp.pop %v1470
    %v1474 = vmul.f32 1.0, %v1473
    %v1475 = vrcp.pop %v1471
    %v1476 = vmul.f32 1.0, %v1475
    %v1477 = vrcp.pop %v1472
    %v1478 = vmul.f32 1.0, %v1477
    %v1479 = vtanh.pop %v1459
    %v1480 = vmul.f32 %v1476, %v1312
    %v1481 = vmul.f32 %v1474, %v1479
    %v1482 = vadd.f32 %v1480, %v1481
    %v1483 = vtanh.pop %v1482
    %v1484 = vmul.f32 %v1478, %v1483
    %v1485 = vld [vmem:[#allocation2 + $0xe0] sm:$0xff]
    %v1486 = vld [vmem:[#allocation2 + $0xe8] sm:$0xff]
    %v1487 = vld [vmem:[#allocation2 + $0xf0] sm:$0xff]
    %v1488 = vld [vmem:[#allocation2 + $0xf8] sm:$0xff]
    %1489 = vmatprep.subr.mxu0 %v462
    %1490 = vmatpush1.msra.mxu0 %v461
    %1491 = vmatprep.subr.mxu0 %v458
    %1492 = vmatpush1.msra.mxu0 %v457
    %1493 = vmatprep.subr.mxu0 %v454
    %1494 = vmatpush1.msra.mxu0 %v453
    %1495 = vmatprep.subr.mxu0 %v450
    %1496 = vmatpush1.msra.mxu0 %v449
    %1497 = vmatprep.subr.mxu0 %v446
    %1498 = vmatpush1.msra.mxu0 %v445
    %1499 = vmatprep.subr.mxu0 %v442
    %1500 = vmatpush1.msra.mxu0 %v441
    %1501 = vmatprep.subr.mxu0 %v438
    %1502 = vmatpush1.msra.mxu0 %v437
    %1503 = vmatprep.subr.mxu0 %v434
    %1504 = vmatpush1.msra.mxu0 %v433
    %1505 = vmatprep.subr.mxu0 %v430
    %1506 = vmatpush1.msra.mxu0 %v429
    %1507 = vmatprep.subr.mxu0 %v426
    %1508 = vmatpush1.msra.mxu0 %v425
    %1509 = vmatprep.subr.mxu0 %v422
    %1510 = vmatpush1.msra.mxu0 %v421
    %1511 = vmatprep.subr.mxu0 %v418
    %1512 = vmatpush1.msra.mxu0 %v417
    %1513 = vmatprep.subr.mxu0 %v414
    %1514 = vmatpush1.msra.mxu0 %v413
    %1515 = vmatprep.subr.mxu0 %v410
    %1516 = vmatpush1.msra.mxu0 %v409
    %1517 = vmatprep.subr.mxu0 %v406
    %1518 = vmatpush1.msra.mxu0 %v405
    %1519 = vmatprep.subr.mxu0 %v402
    %1520 = vmatpush1.msra.mxu0 %v401
    %1521 = vmatprep.subr.mxu0 0.0
    %1522 = vmatpush2.msra.mxu0 0.0
    %1523 = vmatprep.subr.mxu0 0.0
    %1524 = vmatpush2.msra.mxu0 0.0
    %1525 = vmatprep.subr.mxu0 0.0
    %1526 = vmatpush2.msra.mxu0 0.0
    %1527 = vmatprep.subr.mxu0 0.0
    %1528 = vmatpush2.msra.mxu0 0.0
    %1529 = vmatprep.subr.mxu0 0.0
    %1530 = vmatpush2.msra.mxu0 0.0
    %1531 = vmatprep.subr.mxu0 0.0
    %1532 = vmatpush2.msra.mxu0 0.0
    %1533 = vmatprep.subr.mxu0 0.0
    %1534 = vmatpush2.msra.mxu0 0.0
    %1535 = vmatprep.subr.mxu0 0.0
    %1536 = vmatpush2.msra.mxu0 0.0
    %1537 = vmatprep.subr.mxu0 0.0
    %1538 = vmatpush2.msra.mxu0 0.0
    %1539 = vmatprep.subr.mxu0 0.0
    %1540 = vmatpush2.msra.mxu0 0.0
    %1541 = vmatprep.subr.mxu0 0.0
    %1542 = vmatpush2.msra.mxu0 0.0
    %1543 = vmatprep.subr.mxu0 0.0
    %1544 = vmatpush2.msra.mxu0 0.0
    %1545 = vmatprep.subr.mxu0 0.0
    %1546 = vmatpush2.msra.mxu0 0.0
    %1547 = vmatprep.subr.mxu0 0.0
    %1548 = vmatpush2.msra.mxu0 0.0
    %1549 = vmatprep.subr.mxu0 0.0
    %1550 = vmatpush2.msra.mxu0 0.0
    %1551 = vmatprep.subr.mxu0 0.0
    %1552 = vmatpush2.msra.mxu0 0.0
    %1553 = vmatprep.mubr.f32.mxu0 0.0
    %1554 = vmatmul.mubr.f32.gmra.mxu0 %v1484
    %v1555 = vpop.f32.mrf.mxu0
    %v1556 = vadd.f32 %v1485, %v1555
    %v1557 = vpop.f32.mrf.mxu0
    %v1558 = vadd.f32 %v1486, %v1557
    %1559 = vdwg.mxu0
    %1560 = vmatprep.subr.mxu0 %v464
    %1561 = vmatpush1.msra.mxu0 %v463
    %1562 = vmatprep.subr.mxu0 %v460
    %1563 = vmatpush1.msra.mxu0 %v459
    %1564 = vmatprep.subr.mxu0 %v456
    %1565 = vmatpush1.msra.mxu0 %v455
    %1566 = vmatprep.subr.mxu0 %v452
    %1567 = vmatpush1.msra.mxu0 %v451
    %1568 = vmatprep.subr.mxu0 %v448
    %1569 = vmatpush1.msra.mxu0 %v447
    %1570 = vmatprep.subr.mxu0 %v444
    %1571 = vmatpush1.msra.mxu0 %v443
    %1572 = vmatprep.subr.mxu0 %v440
    %1573 = vmatpush1.msra.mxu0 %v439
    %1574 = vmatprep.subr.mxu0 %v436
    %1575 = vmatpush1.msra.mxu0 %v435
    %1576 = vmatprep.subr.mxu0 %v432
    %1577 = vmatpush1.msra.mxu0 %v431
    %1578 = vmatprep.subr.mxu0 %v428
    %1579 = vmatpush1.msra.mxu0 %v427
    %1580 = vmatprep.subr.mxu0 %v424
    %1581 = vmatpush1.msra.mxu0 %v423
    %1582 = vmatprep.subr.mxu0 %v420
    %1583 = vmatpush1.msra.mxu0 %v419
    %1584 = vmatprep.subr.mxu0 %v416
    %1585 = vmatpush1.msra.mxu0 %v415
    %1586 = vmatprep.subr.mxu0 %v412
    %1587 = vmatpush1.msra.mxu0 %v411
    %1588 = vmatprep.subr.mxu0 %v408
    %1589 = vmatpush1.msra.mxu0 %v407
    %1590 = vmatprep.subr.mxu0 %v404
    %1591 = vmatpush1.msra.mxu0 %v403
    %1592 = vmatprep.subr.mxu0 0.0
    %1593 = vmatpush2.msra.mxu0 0.0
    %1594 = vmatprep.subr.mxu0 0.0
    %1595 = vmatpush2.msra.mxu0 0.0
    %1596 = vmatprep.subr.mxu0 0.0
    %1597 = vmatpush2.msra.mxu0 0.0
    %1598 = vmatprep.subr.mxu0 0.0
    %1599 = vmatpush2.msra.mxu0 0.0
    %1600 = vmatprep.subr.mxu0 0.0
    %1601 = vmatpush2.msra.mxu0 0.0
    %1602 = vmatprep.subr.mxu0 0.0
    %1603 = vmatpush2.msra.mxu0 0.0
    %1604 = vmatprep.subr.mxu0 0.0
    %1605 = vmatpush2.msra.mxu0 0.0
    %1606 = vmatprep.subr.mxu0 0.0
    %1607 = vmatpush2.msra.mxu0 0.0
    %1608 = vmatprep.subr.mxu0 0.0
    %1609 = vmatpush2.msra.mxu0 0.0
    %1610 = vmatprep.subr.mxu0 0.0
    %1611 = vmatpush2.msra.mxu0 0.0
    %1612 = vmatprep.subr.mxu0 0.0
    %1613 = vmatpush2.msra.mxu0 0.0
    %1614 = vmatprep.subr.mxu0 0.0
    %1615 = vmatpush2.msra.mxu0 0.0
    %1616 = vmatprep.subr.mxu0 0.0
    %1617 = vmatpush2.msra.mxu0 0.0
    %1618 = vmatprep.subr.mxu0 0.0
    %1619 = vmatpush2.msra.mxu0 0.0
    %1620 = vmatprep.subr.mxu0 0.0
    %1621 = vmatpush2.msra.mxu0 0.0
    %1622 = vmatprep.subr.mxu0 0.0
    %1623 = vmatpush2.msra.mxu0 0.0
    %1624 = vmatprep.mubr.f32.mxu0 0.0
    %1625 = vmatmul.mubr.f32.gmra.mxu0 %v1484
    %v1626 = vpop.f32.mrf.mxu0
    %v1627 = vadd.f32 %v1487, %v1626
    %v1628 = vpop.f32.mrf.mxu0
    %v1629 = vadd.f32 %v1488, %v1628
    %1630 = vdwg.mxu0
    %v1631 = vxor.u32 %v1556, 2147483648
    %v1632 = vxor.u32 %v1558, 2147483648
    %v1633 = vxor.u32 %v1627, 2147483648
    %v1634 = vmul.f32 %v1631, 1.442695
    %v1635 = vpow.pop %v1634
    %v1636 = vmul.f32 %v1632, 1.442695
    %v1637 = vpow.pop %v1636
    %v1638 = vmul.f32 %v1633, 1.442695
    %v1639 = vpow.pop %v1638
    %v1640 = vadd.f32 %v1635, 1.0
    %v1641 = vadd.f32 %v1637, 1.0
    %v1642 = vadd.f32 %v1639, 1.0
    %v1643 = vrcp.pop %v1640
    %v1644 = vmul.f32 1.0, %v1643
    %v1645 = vrcp.pop %v1641
    %v1646 = vmul.f32 1.0, %v1645
    %v1647 = vrcp.pop %v1642
    %v1648 = vmul.f32 1.0, %v1647
    %v1649 = vtanh.pop %v1629
    %v1650 = vmul.f32 %v1646, %v1482
    %v1651 = vmul.f32 %v1644, %v1649
    %v1652 = vadd.f32 %v1650, %v1651
    %v1653 = vtanh.pop %v1652
    %v1654 = vmul.f32 %v1648, %v1653
    %1655 = vmatprep.subr.mxu0 %v462
    %1656 = vmatpush1.msra.mxu0 %v461
    %1657 = vmatprep.subr.mxu0 %v458
    %1658 = vmatpush1.msra.mxu0 %v457
    %1659 = vmatprep.subr.mxu0 %v454
    %1660 = vmatpush1.msra.mxu0 %v453
    %1661 = vmatprep.subr.mxu0 %v450
    %1662 = vmatpush1.msra.mxu0 %v449
    %1663 = vmatprep.subr.mxu0 %v446
    %1664 = vmatpush1.msra.mxu0 %v445
    %1665 = vmatprep.subr.mxu0 %v442
    %1666 = vmatpush1.msra.mxu0 %v441
    %1667 = vmatprep.subr.mxu0 %v438
    %1668 = vmatpush1.msra.mxu0 %v437
    %1669 = vmatprep.subr.mxu0 %v434
    %1670 = vmatpush1.msra.mxu0 %v433
    %1671 = vmatprep.subr.mxu0 %v430
    %1672 = vmatpush1.msra.mxu0 %v429
    %1673 = vmatprep.subr.mxu0 %v426
    %1674 = vmatpush1.msra.mxu0 %v425
    %1675 = vmatprep.subr.mxu0 %v422
    %1676 = vmatpush1.msra.mxu0 %v421
    %1677 = vmatprep.subr.mxu0 %v418
    %1678 = vmatpush1.msra.mxu0 %v417
    %1679 = vmatprep.subr.mxu0 %v414
    %1680 = vmatpush1.msra.mxu0 %v413
    %1681 = vmatprep.subr.mxu0 %v410
    %1682 = vmatpush1.msra.mxu0 %v409
    %1683 = vmatprep.subr.mxu0 %v406
    %1684 = vmatpush1.msra.mxu0 %v405
    %1685 = vmatprep.subr.mxu0 %v402
    %1686 = vmatpush1.msra.mxu0 %v401
    %1687 = vmatprep.subr.mxu0 0.0
    %1688 = vmatpush2.msra.mxu0 0.0
    %1689 = vmatprep.subr.mxu0 0.0
    %1690 = vmatpush2.msra.mxu0 0.0
    %1691 = vmatprep.subr.mxu0 0.0
    %1692 = vmatpush2.msra.mxu0 0.0
    %1693 = vmatprep.subr.mxu0 0.0
    %1694 = vmatpush2.msra.mxu0 0.0
    %1695 = vmatprep.subr.mxu0 0.0
    %1696 = vmatpush2.msra.mxu0 0.0
    %1697 = vmatprep.subr.mxu0 0.0
    %1698 = vmatpush2.msra.mxu0 0.0
    %1699 = vmatprep.subr.mxu0 0.0
    %1700 = vmatpush2.msra.mxu0 0.0
    %1701 = vmatprep.subr.mxu0 0.0
    %1702 = vmatpush2.msra.mxu0 0.0
    %1703 = vmatprep.subr.mxu0 0.0
    %1704 = vmatpush2.msra.mxu0 0.0
    %1705 = vmatprep.subr.mxu0 0.0
    %1706 = vmatpush2.msra.mxu0 0.0
    %1707 = vmatprep.subr.mxu0 0.0
    %1708 = vmatpush2.msra.mxu0 0.0
    %1709 = vmatprep.subr.mxu0 0.0
    %1710 = vmatpush2.msra.mxu0 0.0
    %1711 = vmatprep.subr.mxu0 0.0
    %1712 = vmatpush2.msra.mxu0 0.0
    %1713 = vmatprep.subr.mxu0 0.0
    %1714 = vmatpush2.msra.mxu0 0.0
    %1715 = vmatprep.subr.mxu0 0.0
    %1716 = vmatpush2.msra.mxu0 0.0
    %1717 = vmatprep.subr.mxu0 0.0
    %1718 = vmatpush2.msra.mxu0 0.0
    %1719 = vmatprep.mubr.f32.mxu0 0.0
    %1720 = vmatmul.mubr.f32.gmra.mxu0 %v1654
    %v1721 = vpop.f32.mrf.mxu0
    %v1722 = vadd.f32 %v1485, %v1721
    %v1723 = vpop.f32.mrf.mxu0
    %v1724 = vadd.f32 %v1486, %v1723
    %1725 = vdwg.mxu0
    %1726 = vmatprep.subr.mxu0 %v464
    %1727 = vmatpush1.msra.mxu0 %v463
    %1728 = vmatprep.subr.mxu0 %v460
    %1729 = vmatpush1.msra.mxu0 %v459
    %1730 = vmatprep.subr.mxu0 %v456
    %1731 = vmatpush1.msra.mxu0 %v455
    %1732 = vmatprep.subr.mxu0 %v452
    %1733 = vmatpush1.msra.mxu0 %v451
    %1734 = vmatprep.subr.mxu0 %v448
    %1735 = vmatpush1.msra.mxu0 %v447
    %1736 = vmatprep.subr.mxu0 %v444
    %1737 = vmatpush1.msra.mxu0 %v443
    %1738 = vmatprep.subr.mxu0 %v440
    %1739 = vmatpush1.msra.mxu0 %v439
    %1740 = vmatprep.subr.mxu0 %v436
    %1741 = vmatpush1.msra.mxu0 %v435
    %1742 = vmatprep.subr.mxu0 %v432
    %1743 = vmatpush1.msra.mxu0 %v431
    %1744 = vmatprep.subr.mxu0 %v428
    %1745 = vmatpush1.msra.mxu0 %v427
    %1746 = vmatprep.subr.mxu0 %v424
    %1747 = vmatpush1.msra.mxu0 %v423
    %1748 = vmatprep.subr.mxu0 %v420
    %1749 = vmatpush1.msra.mxu0 %v419
    %1750 = vmatprep.subr.mxu0 %v416
    %1751 = vmatpush1.msra.mxu0 %v415
    %1752 = vmatprep.subr.mxu0 %v412
    %1753 = vmatpush1.msra.mxu0 %v411
    %1754 = vmatprep.subr.mxu0 %v408
    %1755 = vmatpush1.msra.mxu0 %v407
    %1756 = vmatprep.subr.mxu0 %v404
    %1757 = vmatpush1.msra.mxu0 %v403
    %1758 = vmatprep.subr.mxu0 0.0
    %1759 = vmatpush2.msra.mxu0 0.0
    %1760 = vmatprep.subr.mxu0 0.0
    %1761 = vmatpush2.msra.mxu0 0.0
    %1762 = vmatprep.subr.mxu0 0.0
    %1763 = vmatpush2.msra.mxu0 0.0
    %1764 = vmatprep.subr.mxu0 0.0
    %1765 = vmatpush2.msra.mxu0 0.0
    %1766 = vmatprep.subr.mxu0 0.0
    %1767 = vmatpush2.msra.mxu0 0.0
    %1768 = vmatprep.subr.mxu0 0.0
    %1769 = vmatpush2.msra.mxu0 0.0
    %1770 = vmatprep.subr.mxu0 0.0
    %1771 = vmatpush2.msra.mxu0 0.0
    %1772 = vmatprep.subr.mxu0 0.0
    %1773 = vmatpush2.msra.mxu0 0.0
    %1774 = vmatprep.subr.mxu0 0.0
    %1775 = vmatpush2.msra.mxu0 0.0
    %1776 = vmatprep.subr.mxu0 0.0
    %1777 = vmatpush2.msra.mxu0 0.0
    %1778 = vmatprep.subr.mxu0 0.0
    %1779 = vmatpush2.msra.mxu0 0.0
    %1780 = vmatprep.subr.mxu0 0.0
    %1781 = vmatpush2.msra.mxu0 0.0
    %1782 = vmatprep.subr.mxu0 0.0
    %1783 = vmatpush2.msra.mxu0 0.0
    %1784 = vmatprep.subr.mxu0 0.0
    %1785 = vmatpush2.msra.mxu0 0.0
    %1786 = vmatprep.subr.mxu0 0.0
    %1787 = vmatpush2.msra.mxu0 0.0
    %1788 = vmatprep.subr.mxu0 0.0
    %1789 = vmatpush2.msra.mxu0 0.0
    %1790 = vmatprep.mubr.f32.mxu0 0.0
    %1791 = vmatmul.mubr.f32.gmra.mxu0 %v1654
    %v1792 = vpop.f32.mrf.mxu0
    %v1793 = vadd.f32 %v1487, %v1792
    %v1794 = vpop.f32.mrf.mxu0
    %v1795 = vadd.f32 %v1488, %v1794
    %1796 = vdwg.mxu0
    %v1797 = vxor.u32 %v1722, 2147483648
    %v1798 = vxor.u32 %v1724, 2147483648
    %v1799 = vxor.u32 %v1793, 2147483648
    %v1800 = vmul.f32 %v1797, 1.442695
    %v1801 = vpow.pop %v1800
    %v1802 = vmul.f32 %v1798, 1.442695
    %v1803 = vpow.pop %v1802
    %v1804 = vmul.f32 %v1799, 1.442695
    %v1805 = vpow.pop %v1804
    %v1806 = vadd.f32 %v1801, 1.0
    %v1807 = vadd.f32 %v1803, 1.0
    %v1808 = vadd.f32 %v1805, 1.0
    %v1809 = vrcp.pop %v1806
    %v1810 = vmul.f32 1.0, %v1809
    %v1811 = vrcp.pop %v1807
    %v1812 = vmul.f32 1.0, %v1811
    %v1813 = vrcp.pop %v1808
    %v1814 = vmul.f32 1.0, %v1813
    %v1815 = vtanh.pop %v1795
    %v1816 = vmul.f32 %v1812, %v1652
    %v1817 = vmul.f32 %v1810, %v1815
    %v1818 = vadd.f32 %v1816, %v1817
    %v1819 = vtanh.pop %v1818
    %v1820 = vmul.f32 %v1814, %v1819
    %v1821 = vld [vmem:[%s4] sm:$0xff]
    %v1822 = vld [vmem:[%s4 + $0x8] sm:$0xff]
    %v1823 = vld [vmem:[%s4 + $0x10] sm:$0xff]
    %v1824 = vld [vmem:[%s4 + $0x18] sm:$0xff]
    %v1825 = vld [vmem:[%s4 + $0x20] sm:$0xff]
    %v1826 = vld [vmem:[%s4 + $0x28] sm:$0xff]
    %v1827 = vld [vmem:[%s4 + $0x30] sm:$0xff]
    %v1828 = vld [vmem:[%s4 + $0x38] sm:$0xff]
    %v1829 = vld [vmem:[%s4 + $0x40] sm:$0xff]
    %v1830 = vld [vmem:[%s4 + $0x48] sm:$0xff]
    %v1831 = vld [vmem:[%s4 + $0x50] sm:$0xff]
    %v1832 = vld [vmem:[%s4 + $0x58] sm:$0xff]
    %v1833 = vld [vmem:[%s4 + $0x60] sm:$0xff]
    %v1834 = vld [vmem:[%s4 + $0x68] sm:$0xff]
    %v1835 = vld [vmem:[%s4 + $0x70] sm:$0xff]
    %v1836 = vld [vmem:[%s4 + $0x78] sm:$0xff]
    %v1837 = vld [vmem:[%s5] sm:$0x1]
    %v1839 = vlaneseq
    %v1840 = vshrl.u32 %v1839, 7
    %v1841 = vsub.s32 0, %v1840
    %v1842 = vrot.slane %v1837, %v1841
    %1844 = vmatprep.subr.mxu0 0.0
    %1845 = vmatpush1.msra.mxu0 %v1836
    %1846 = vmatprep.subr.mxu0 0.0
    %1847 = vmatpush1.msra.mxu0 %v1835
    %1848 = vmatprep.subr.mxu0 0.0
    %1849 = vmatpush1.msra.mxu0 %v1834
    %1850 = vmatprep.subr.mxu0 0.0
    %1851 = vmatpush1.msra.mxu0 %v1833
    %1852 = vmatprep.subr.mxu0 0.0
    %1853 = vmatpush1.msra.mxu0 %v1832
    %1854 = vmatprep.subr.mxu0 0.0
    %1855 = vmatpush1.msra.mxu0 %v1831
    %1856 = vmatprep.subr.mxu0 0.0
    %1857 = vmatpush1.msra.mxu0 %v1830
    %1858 = vmatprep.subr.mxu0 0.0
    %1859 = vmatpush1.msra.mxu0 %v1829
    %1860 = vmatprep.subr.mxu0 0.0
    %1861 = vmatpush1.msra.mxu0 %v1828
    %1862 = vmatprep.subr.mxu0 0.0
    %1863 = vmatpush1.msra.mxu0 %v1827
    %1864 = vmatprep.subr.mxu0 0.0
    %1865 = vmatpush1.msra.mxu0 %v1826
    %1866 = vmatprep.subr.mxu0 0.0
    %1867 = vmatpush1.msra.mxu0 %v1825
    %1868 = vmatprep.subr.mxu0 0.0
    %1869 = vmatpush1.msra.mxu0 %v1824
    %1870 = vmatprep.subr.mxu0 0.0
    %1871 = vmatpush1.msra.mxu0 %v1823
    %1872 = vmatprep.subr.mxu0 0.0
    %1873 = vmatpush1.msra.mxu0 %v1822
    %1874 = vmatprep.subr.mxu0 0.0
    %1875 = vmatpush1.msra.mxu0 %v1821
    %1876 = vmatprep.subr.mxu0 0.0
    %1877 = vmatpush2.msra.mxu0 0.0
    %1878 = vmatprep.subr.mxu0 0.0
    %1879 = vmatpush2.msra.mxu0 0.0
    %1880 = vmatprep.subr.mxu0 0.0
    %1881 = vmatpush2.msra.mxu0 0.0
    %1882 = vmatprep.subr.mxu0 0.0
    %1883 = vmatpush2.msra.mxu0 0.0
    %1884 = vmatprep.subr.mxu0 0.0
    %1885 = vmatpush2.msra.mxu0 0.0
    %1886 = vmatprep.subr.mxu0 0.0
    %1887 = vmatpush2.msra.mxu0 0.0
    %1888 = vmatprep.subr.mxu0 0.0
    %1889 = vmatpush2.msra.mxu0 0.0
    %1890 = vmatprep.subr.mxu0 0.0
    %1891 = vmatpush2.msra.mxu0 0.0
    %1892 = vmatprep.subr.mxu0 0.0
    %1893 = vmatpush2.msra.mxu0 0.0
    %1894 = vmatprep.subr.mxu0 0.0
    %1895 = vmatpush2.msra.mxu0 0.0
    %1896 = vmatprep.subr.mxu0 0.0
    %1897 = vmatpush2.msra.mxu0 0.0
    %1898 = vmatprep.subr.mxu0 0.0
    %1899 = vmatpush2.msra.mxu0 0.0
    %1900 = vmatprep.subr.mxu0 0.0
    %1901 = vmatpush2.msra.mxu0 0.0
    %1902 = vmatprep.subr.mxu0 0.0
    %1903 = vmatpush2.msra.mxu0 0.0
    %1904 = vmatprep.subr.mxu0 0.0
    %1905 = vmatpush2.msra.mxu0 0.0
    %1906 = vmatprep.subr.mxu0 0.0
    %1907 = vmatpush2.msra.mxu0 0.0
    %1908 = vmatprep.mubr.f32.mxu0 0.0
    %1909 = vmatmul.mubr.f32.gmra.mxu0 %v1820
    %v1910 = vpop.f32.mrf.mxu0
    %v1911 = vadd.f32 %v1842, %v1910
    %v1912 = vpop.f32.mrf.mxu0
    %1913 = vdwg.mxu0
    %vm1914 = vcmask 48128
    %1915 = vst.msk [vmem:[#allocation6] sm:$0xff] %vm1914, %v1911
    // Predicated region
    $region30: #{lstm_model_forward.1} parent=1 // pred_check
      _
    $region31: #{lstm_model_forward.1} parent=1 // pred_check_branch
      %1917 = sbr.rel (0) target = $region33
    $region32: #{lstm_model_forward.1} parent=1 // pred_region
      %s1919 = ssub.s32 128, 128
      %1920 = vsyncadd [#allocation5], %s1919
      %s1922 = sshll.u32 [#allocation6], 4
      %s1923 = int_to_ptr.vmem [resolvable:$true] %s1922
      %1925 = dma.vmem_to_hbm [thread:$0]  %s1923, 128, %s6, [#allocation5]
    $region33: #{lstm_model_forward.1} parent=1 // pred_fallthru
      _
    // Predicated region
    $region34: #{lstm_model_forward.1} parent=1 // pred_check
      _
    $region35: #{lstm_model_forward.1} parent=1 // pred_check_branch
      %1927 = sbr.rel (0) target = $region37
    $region36: #{lstm_model_forward.1} parent=1 // pred_region
      %1928 = dma.done [#allocation5], 128
    $region37: #{lstm_model_forward.1} parent=1 // pred_fallthru
      _
    %1929 = vsyncpa [#allocation4], 1
    %1930 = vsyncpa [#allocation5], 1

</llo_original>
